<compile_context>
chip_gen: v7x
topology: tpu7x:2x2x1
jax: 0.10.0
libtpu: 0.0.40
codegen_flags: <defaults>
</compile_context>

<pallas_src>
import jax
import jax.numpy as jnp
from jax import lax
from jax.experimental import pallas as pl
from jax.experimental.pallas import tpu as pltpu


def _round_up(x, m):
    return (x + m - 1) // m * m


def _largest_divisor_leq(n, cap):
    for d in range(min(n, cap), 0, -1):
        if n % d == 0:
            return d
    return 1


# ----------------------------------------------------------------------------------
# Pass 1: x-side pre-activations for the whole sequence (non-recurrent, parallel).
# ----------------------------------------------------------------------------------
def _xproj_kernel(x_ref, wx_ref, bx_ref, xg_ref):
    # (rows, I) @ (I, 3*Hp) + (1, 3*Hp) -> (rows, 3*Hp)   (lane-dense output)
    xg_ref[...] = (
        jnp.dot(x_ref[...], wx_ref[...], preferred_element_type=jnp.float32)
        + bx_ref[...])


# ----------------------------------------------------------------------------------
# Pass 2: sequential GRU recurrence; only h-dependent work stays on the serial path.
# ----------------------------------------------------------------------------------
def _gru_recurrent_kernel(xg_ref, h0_ref, wh3_ref, bh_ref, hs_ref, h_scratch):
    hp = h_scratch.shape[-1]
    t_chunk = xg_ref.shape[0]

    @pl.when(pl.program_id(0) == 0)
    def _():
        h_scratch[...] = h0_ref[...]

    wh3 = wh3_ref[...]      # (Hp, 3*Hp) fused [Wrh | Wuh | Whh], resident
    bh = bh_ref[...]        # (1, Hp) new-gate hidden bias (must stay inside tanh(r*...))

    def step(i, h):
        # Single fused h-side matmul for all three gates.
        g = jnp.dot(h, wh3, preferred_element_type=jnp.float32)     # (B, 3*Hp)
        xg = xg_ref[i]                                              # (B, 3*Hp) precomputed
        r = jax.nn.sigmoid(xg[:, 0:hp] + g[:, 0:hp])
        z = jax.nn.sigmoid(xg[:, hp:2 * hp] + g[:, hp:2 * hp])
        n = jnp.tanh(xg[:, 2 * hp:] + r * (g[:, 2 * hp:] + bh))
        h_new = (1.0 - z) * n + z * h
        hs_ref[i] = h_new                                           # lane-dense store
        return h_new

    h_scratch[...] = lax.fori_loop(0, t_chunk, step, h_scratch[...], unroll=True)


# ----------------------------------------------------------------------------------
# Wrapper
# ----------------------------------------------------------------------------------
def my_gru_forward(input_sequence, initial_hidden, params, *, t_chunk=8):
    """Pallas implementation of MyGRU.forward.

    input_sequence: (seq_len, batch, input_size) float32
    initial_hidden: (batch, hidden_size) float32 or None (-> zeros)
    Returns (hidden_states, final_hidden).
    """
    seq_len, batch, input_size = input_sequence.shape
    Wr, br = params["reset_w"], params["reset_b"]
    Wu, bu = params["update_w"], params["update_b"]
    Wi, bi = params["new_in_w"], params["new_in_b"]
    Wh, bh = params["new_hid_w"], params["new_hid_b"]
    H = Wr.shape[0]
    I = input_size
    Hp = _round_up(H, 128)          # lane-dense per-gate / hidden width
    G = 3 * Hp

    if initial_hidden is None:
        initial_hidden = jnp.zeros((batch, H), jnp.float32)

    # --- parameter plumbing: split the concat-Linear weights, fold the ones-columns.
    # Concat layout for reset/update: [x (I), 1, h (H), 1]; new-input: [x, 1]; new-hidden: [h, 1].
    wrx, wrh = Wr[:, :I].T, Wr[:, I + 1:I + 1 + H].T
    br_eff = br + Wr[:, I] + Wr[:, I + 1 + H]
    wux, wuh = Wu[:, :I].T, Wu[:, I + 1:I + 1 + H].T
    bu_eff = bu + Wu[:, I] + Wu[:, I + 1 + H]
    wix, bi_eff = Wi[:, :I].T, bi + Wi[:, I]
    whh, bh_eff = Wh[:, :H].T, bh + Wh[:, H]

    padc = lambda w: jnp.pad(w, ((0, 0), (0, Hp - H)))      # pad gate (output) dim
    padv = lambda v: jnp.pad(v, (0, Hp - H))

    wx3 = jnp.concatenate([padc(wrx), padc(wux), padc(wix)], axis=1)            # (I, 3Hp)
    bx3 = jnp.concatenate([padv(br_eff), padv(bu_eff), padv(bi_eff)])[None, :]  # (1, 3Hp)
    wh3 = jnp.pad(jnp.concatenate([padc(wrh), padc(wuh), padc(whh)], axis=1),
                  ((0, Hp - H), (0, 0)))                                        # (Hp, 3Hp)
    bh_p = padv(bh_eff)[None, :]                                                # (1, Hp)
    h0_p = jnp.pad(initial_hidden.astype(jnp.float32), ((0, 0), (0, Hp - H)))   # (B, Hp)

    # ---- pass 1: hoisted x-projections (one big, MXU-efficient batched matmul) ----
    rows = seq_len * batch
    x2d = input_sequence.reshape(rows, I).astype(jnp.float32)
    row_chunk = _largest_divisor_leq(rows, 512)
    xg2d = pl.pallas_call(
        _xproj_kernel,
        out_shape=jax.ShapeDtypeStruct((rows, G), jnp.float32),
        grid_spec=pltpu.PrefetchScalarGridSpec(
            num_scalar_prefetch=0,
            grid=(rows // row_chunk,),
            in_specs=[
                pl.BlockSpec((row_chunk, I), lambda r: (r, 0)),
                pl.BlockSpec((I, G), lambda r: (0, 0)),
                pl.BlockSpec((1, G), lambda r: (0, 0)),
            ],
            out_specs=pl.BlockSpec((row_chunk, G), lambda r: (r, 0)),
        ),
        compiler_params=pltpu.CompilerParams(
            dimension_semantics=("parallel",)),
    )(x2d, wx3, bx3)
    xg = xg2d.reshape(seq_len, batch, G)

    # ---- pass 2: sequential recurrence, time-chunked grid with VMEM-carried h ----
    tc = _largest_divisor_leq(seq_len, t_chunk)
    hs_p = pl.pallas_call(
        _gru_recurrent_kernel,
        out_shape=jax.ShapeDtypeStruct((seq_len, batch, Hp), jnp.float32),
        grid_spec=pltpu.PrefetchScalarGridSpec(
            num_scalar_prefetch=0,
            grid=(seq_len // tc,),
            in_specs=[
                pl.BlockSpec((tc, batch, G), lambda c: (c, 0, 0)),   # precomputed x gates
                pl.BlockSpec((batch, Hp), lambda c: (0, 0)),         # h0 (padded)
                pl.BlockSpec((Hp, G), lambda c: (0, 0)),             # fused h-side weight
                pl.BlockSpec((1, Hp), lambda c: (0, 0)),             # new-gate hidden bias
            ],
            out_specs=pl.BlockSpec((tc, batch, Hp), lambda c: (c, 0, 0)),
            scratch_shapes=[pltpu.VMEM((batch, Hp), jnp.float32)],
        ),
        compiler_params=pltpu.CompilerParams(
            dimension_semantics=("arbitrary",),        # sequential h carry over time
            vmem_limit_bytes=32 * 1024 * 1024),
    )(xg, h0_p, wh3, bh_p)

    hidden_states = hs_p[:, :, :H]          # drop zero-padded lanes
    return hidden_states, hidden_states[-1]


# ----------------------------------------------------------------------------------
# Test utilities
# ----------------------------------------------------------------------------------
def make_params(key, input_size, hidden_size):
    """Deterministic synthetic parameters with the shapes nn.Linear would have."""
    ks = jax.random.split(key, 8)

    def lin(kw, kb, out_f, in_f):
        scale = 1.0 / jnp.sqrt(in_f)
        w = jax.random.uniform(kw, (out_f, in_f), jnp.float32, -scale, scale)
        b = jax.random.uniform(kb, (out_f,), jnp.float32, -scale, scale)
        return w, b

    Wr, br = lin(ks[0], ks[1], hidden_size, input_size + hidden_size + 2)
    Wu, bu = lin(ks[2], ks[3], hidden_size, input_size + hidden_size + 2)
    Wi, bi = lin(ks[4], ks[5], hidden_size, input_size + 1)
    Wh, bh = lin(ks[6], ks[7], hidden_size, hidden_size + 1)
    return {"reset_w": Wr, "reset_b": br,
            "update_w": Wu, "update_b": bu,
            "new_in_w": Wi, "new_in_b": bi,
            "new_hid_w": Wh, "new_hid_b": bh}


def ref_gru(input_sequence, initial_hidden, params):
    """Pure-JAX reference that mirrors the PyTorch forward literally (concat + ones)."""
    seq_len, batch, _ = input_sequence.shape
    Wr, br = params["reset_w"], params["reset_b"]
    Wu, bu = params["update_w"], params["update_b"]
    Wi, bi = params["new_in_w"], params["new_in_b"]
    Wh, bh = params["new_hid_w"], params["new_hid_b"]
    H = Wr.shape[0]
    h = (jnp.zeros((batch, H), jnp.float32)
         if initial_hidden is None else initial_hidden)
    ones = jnp.ones((batch, 1), jnp.float32)
    hs = []
    for t in range(seq_len):
        x = input_sequence[t]
        xb = jnp.concatenate([x, ones], axis=1)
        hb = jnp.concatenate([h, ones], axis=1)
        inp = jnp.concatenate([xb, hb], axis=1)
        r = jax.nn.sigmoid(inp @ Wr.T + br)
        z = jax.nn.sigmoid(inp @ Wu.T + bu)
        n = jnp.tanh(xb @ Wi.T + bi + r * (hb @ Wh.T + bh))
        h = (1.0 - z) * n + z * h
        hs.append(h)
    return jnp.stack(hs, axis=0), h


if __name__ == "__main__":
    seq_len, batch, input_size, hidden_size = 16, 8, 16, 32

    key = jax.random.PRNGKey(0)
    k_x, k_h, k_p = jax.random.split(key, 3)
    x_seq = jax.random.normal(k_x, (seq_len, batch, input_size), jnp.float32)
    h0 = jax.random.normal(k_h, (batch, hidden_size), jnp.float32)
    params = make_params(k_p, input_size, hidden_size)

    gru = jax.jit(my_gru_forward)

    # Default (None -> zeros) initial hidden, matching the module's default.
    hs, h_last = gru(x_seq, None, params)
    hs = jax.block_until_ready(hs)
    h_last = jax.block_until_ready(h_last)
    hs_ref, h_ref = ref_gru(x_seq, None, params)
    assert hs.shape == (seq_len, batch, hidden_size)
    assert h_last.shape == (batch, hidden_size)
    assert jnp.allclose(hs, hs_ref, rtol=1e-4, atol=1e-4)
    assert jnp.allclose(h_last, h_ref, rtol=1e-4, atol=1e-4)

    # Explicit initial hidden state.
    hs2, h_last2 = gru(x_seq, h0, params)
    hs2 = jax.block_until_ready(hs2)
    h_last2 = jax.block_until_ready(h_last2)
    hs2_ref, h2_ref = ref_gru(x_seq, h0, params)
    assert jnp.allclose(hs2, hs2_ref, rtol=1e-4, atol=1e-4)
    assert jnp.allclose(h_last2, h2_ref, rtol=1e-4, atol=1e-4)

    print("KERNEL_OK")
</pallas_src>

<mosaic_0001>
module attributes {stable_mosaic.version = 11 : i64} {
  func.func @_xproj_kernel(%arg0: i32, %arg1: memref<128x16xf32, #tpu.memory_space<vmem>>, %arg2: memref<16x384xf32, #tpu.memory_space<vmem>>, %arg3: memref<1x384xf32, #tpu.memory_space<vmem>>, %arg4: memref<128x384xf32, #tpu.memory_space<vmem>>) attributes {dimension_semantics = [#tpu.dimension_semantics<parallel>], iteration_bounds = array<i64: 1>, scalar_prefetch = 0 : i64, scratch_operands = 0 : i64, tpu.core_type = #tpu.core_type<tc>, window_params = [{transform_indices = @transform_0, window_bounds = array<i64: 128, 16>}, {pipeline_mode = #tpu.pipeline_mode<synchronous>, transform_indices = @transform_1, window_bounds = array<i64: 16, 384>}, {pipeline_mode = #tpu.pipeline_mode<synchronous>, transform_indices = @transform_2, window_bounds = array<i64: 1, 384>}, {transform_indices = @transform_3, window_bounds = array<i64: 128, 384>}]} {
    %c0 = arith.constant 0 : index
    %c0_0 = arith.constant 0 : index
    %0 = vector.load %arg1[%c0, %c0_0] : memref<128x16xf32, #tpu.memory_space<vmem>>, vector<128x16xf32>
    %c0_1 = arith.constant 0 : index
    %c0_2 = arith.constant 0 : index
    %1 = vector.load %arg2[%c0_1, %c0_2] : memref<16x384xf32, #tpu.memory_space<vmem>>, vector<16x384xf32>
    %cst = arith.constant dense<0.000000e+00> : vector<128x384xf32>
    %2 = tpu.matmul %0, %1, %cst {dimension_numbers = #tpu.dot_dimension_numbers<[1], [0], [0], [1], [0, 0, 1, 1], [], []>} : vector<128x16xf32>, vector<16x384xf32>, vector<128x384xf32> -> vector<128x384xf32>
    %c0_3 = arith.constant 0 : index
    %c0_4 = arith.constant 0 : index
    %3 = vector.load %arg3[%c0_3, %c0_4] : memref<1x384xf32, #tpu.memory_space<vmem>>, vector<1x384xf32>
    %4 = vector.broadcast %3 : vector<1x384xf32> to vector<128x384xf32>
    %5 = arith.addf %2, %4 : vector<128x384xf32>
    %c0_5 = arith.constant 0 : index
    %c0_6 = arith.constant 0 : index
    %6 = vector.load %arg4[%c0_5, %c0_6] : memref<128x384xf32, #tpu.memory_space<vmem>>, vector<128x384xf32>
    tpu.vector_store %arg4[%c0_5, %c0_6], %5 {strides = array<i32>} : memref<128x384xf32, #tpu.memory_space<vmem>>, vector<128x384xf32>,
    return
  }
  func.func @transform_0(%arg0: i32) -> (i32, i32) {
    %c0_i32 = arith.constant 0 : i32
    %c0_i32_0 = arith.constant 0 : i32
    return %arg0, %c0_i32 : i32, i32
  }
  func.func @transform_1(%arg0: i32) -> (i32, i32) {
    %c0_i32 = arith.constant 0 : i32
    %c0_i32_0 = arith.constant 0 : i32
    %c0_i32_1 = arith.constant 0 : i32
    return %c0_i32, %c0_i32_0 : i32, i32
  }
  func.func @transform_2(%arg0: i32) -> (i32, i32) {
    %c0_i32 = arith.constant 0 : i32
    %c0_i32_0 = arith.constant 0 : i32
    %c0_i32_1 = arith.constant 0 : i32
    return %c0_i32, %c0_i32_0 : i32, i32
  }
  func.func @transform_3(%arg0: i32) -> (i32, i32) {
    %c0_i32 = arith.constant 0 : i32
    %c0_i32_0 = arith.constant 0 : i32
    return %arg0, %c0_i32 : i32, i32
  }
}

module attributes {stable_mosaic.version = 11 : i64} {
  func.func @_gru_recurrent_kernel(%arg0: i32, %arg1: memref<8x8x384xf32, #tpu.memory_space<vmem>>, %arg2: memref<8x128xf32, #tpu.memory_space<vmem>>, %arg3: memref<128x384xf32, #tpu.memory_space<vmem>>, %arg4: memref<1x128xf32, #tpu.memory_space<vmem>>, %arg5: memref<8x8x128xf32, #tpu.memory_space<vmem>>, %arg6: memref<8x128xf32, #tpu.memory_space<vmem>>) attributes {dimension_semantics = [#tpu.dimension_semantics<arbitrary>], iteration_bounds = array<i64: 2>, scalar_prefetch = 0 : i64, scratch_operands = 1 : i64, tpu.core_type = #tpu.core_type<tc>, window_params = [{transform_indices = @transform_0, window_bounds = array<i64: 8, 8, 384>}, {pipeline_mode = #tpu.pipeline_mode<synchronous>, transform_indices = @transform_1, window_bounds = array<i64: 8, 128>}, {pipeline_mode = #tpu.pipeline_mode<synchronous>, transform_indices = @transform_2, window_bounds = array<i64: 128, 384>}, {pipeline_mode = #tpu.pipeline_mode<synchronous>, transform_indices = @transform_3, window_bounds = array<i64: 1, 128>}, {transform_indices = @transform_4, window_bounds = array<i64: 8, 8, 128>}]} {
    %c0_i32 = arith.constant 0 : i32
    %0 = arith.cmpi eq, %arg0, %c0_i32 : i32
    %1 = arith.extui %0 : i1 to i32
    %c0_i32_0 = arith.constant 0 : i32
    %2 = arith.cmpi ne, %1, %c0_i32_0 : i32
    scf.if %2 {
      %c0_72 = arith.constant 0 : index
      %c0_73 = arith.constant 0 : index
      %295 = vector.load %arg2[%c0_72, %c0_73] : memref<8x128xf32, #tpu.memory_space<vmem>>, vector<8x128xf32>
      %c0_74 = arith.constant 0 : index
      %c0_75 = arith.constant 0 : index
      %296 = vector.load %arg6[%c0_74, %c0_75] : memref<8x128xf32, #tpu.memory_space<vmem>>, vector<8x128xf32>
      tpu.vector_store %arg6[%c0_74, %c0_75], %295 {strides = array<i32>} : memref<8x128xf32, #tpu.memory_space<vmem>>, vector<8x128xf32>,
    } else {
    }
    %c0 = arith.constant 0 : index
    %c0_1 = arith.constant 0 : index
    %3 = vector.load %arg3[%c0, %c0_1] : memref<128x384xf32, #tpu.memory_space<vmem>>, vector<128x384xf32>
    %c0_2 = arith.constant 0 : index
    %c0_3 = arith.constant 0 : index
    %4 = vector.load %arg4[%c0_2, %c0_3] : memref<1x128xf32, #tpu.memory_space<vmem>>, vector<1x128xf32>
    %c0_4 = arith.constant 0 : index
    %c0_5 = arith.constant 0 : index
    %5 = vector.load %arg6[%c0_4, %c0_5] : memref<8x128xf32, #tpu.memory_space<vmem>>, vector<8x128xf32>
    %c0_i32_6 = arith.constant 0 : i32
    %cst = arith.constant dense<0.000000e+00> : vector<8x384xf32>
    %6 = tpu.matmul %5, %3, %cst {dimension_numbers = #tpu.dot_dimension_numbers<[1], [0], [0], [1], [0, 0, 1, 1], [], []>} : vector<8x128xf32>, vector<128x384xf32>, vector<8x384xf32> -> vector<8x384xf32>
    %7 = arith.index_cast %c0_i32_6 : i32 to index
    %c0_7 = arith.constant 0 : index
    %c0_8 = arith.constant 0 : index
    %8 = vector.load %arg1[%7, %c0_7, %c0_8] : memref<8x8x384xf32, #tpu.memory_space<vmem>>, vector<1x8x384xf32>
    %9 = vector.shape_cast %8 : vector<1x8x384xf32> to vector<8x384xf32>
    %10 = vector.extract_strided_slice %9 {offsets = [0, 0], sizes = [8, 128], strides = [1, 1]} : vector<8x384xf32> to vector<8x128xf32>
    %11 = vector.extract_strided_slice %6 {offsets = [0, 0], sizes = [8, 128], strides = [1, 1]} : vector<8x384xf32> to vector<8x128xf32>
    %12 = arith.addf %10, %11 : vector<8x128xf32>
    %13 = arith.negf %12 : vector<8x128xf32>
    %14 = math.exp %13 : vector<8x128xf32>
    %cst_9 = arith.constant 1.000000e+00 : f32
    %15 = vector.broadcast %cst_9 : f32 to vector<8x128xf32>
    %16 = arith.addf %15, %14 : vector<8x128xf32>
    %17 = arith.divf %15, %16 : vector<8x128xf32>
    %18 = vector.extract_strided_slice %9 {offsets = [0, 128], sizes = [8, 128], strides = [1, 1]} : vector<8x384xf32> to vector<8x128xf32>
    %19 = vector.extract_strided_slice %6 {offsets = [0, 128], sizes = [8, 128], strides = [1, 1]} : vector<8x384xf32> to vector<8x128xf32>
    %20 = arith.addf %18, %19 : vector<8x128xf32>
    %21 = arith.negf %20 : vector<8x128xf32>
    %22 = math.exp %21 : vector<8x128xf32>
    %cst_10 = arith.constant 1.000000e+00 : f32
    %23 = vector.broadcast %cst_10 : f32 to vector<8x128xf32>
    %24 = arith.addf %23, %22 : vector<8x128xf32>
    %25 = arith.divf %23, %24 : vector<8x128xf32>
    %26 = vector.extract_strided_slice %9 {offsets = [0, 256], sizes = [8, 128], strides = [1, 1]} : vector<8x384xf32> to vector<8x128xf32>
    %27 = vector.extract_strided_slice %6 {offsets = [0, 256], sizes = [8, 128], strides = [1, 1]} : vector<8x384xf32> to vector<8x128xf32>
    %28 = vector.broadcast %4 : vector<1x128xf32> to vector<8x128xf32>
    %29 = arith.addf %27, %28 : vector<8x128xf32>
    %30 = arith.mulf %17, %29 : vector<8x128xf32>
    %31 = arith.addf %26, %30 : vector<8x128xf32>
    %32 = math.tanh %31 : vector<8x128xf32>
    %cst_11 = arith.constant 1.000000e+00 : f32
    %33 = vector.broadcast %cst_11 : f32 to vector<8x128xf32>
    %34 = arith.subf %33, %25 : vector<8x128xf32>
    %35 = arith.mulf %34, %32 : vector<8x128xf32>
    %36 = arith.mulf %25, %5 : vector<8x128xf32>
    %37 = arith.addf %35, %36 : vector<8x128xf32>
    %38 = arith.index_cast %c0_i32_6 : i32 to index
    %c0_12 = arith.constant 0 : index
    %c0_13 = arith.constant 0 : index
    %39 = vector.load %arg5[%38, %c0_12, %c0_13] : memref<8x8x128xf32, #tpu.memory_space<vmem>>, vector<1x8x128xf32>
    %40 = vector.shape_cast %39 : vector<1x8x128xf32> to vector<8x128xf32>
    %41 = vector.shape_cast %37 : vector<8x128xf32> to vector<1x8x128xf32>
    tpu.vector_store %arg5[%38, %c0_12, %c0_13], %41 {strides = array<i32>} : memref<8x8x128xf32, #tpu.memory_space<vmem>>, vector<1x8x128xf32>,
    %c1_i32 = arith.constant 1 : i32
    %cst_14 = arith.constant dense<0.000000e+00> : vector<8x384xf32>
    %42 = tpu.matmul %37, %3, %cst_14 {dimension_numbers = #tpu.dot_dimension_numbers<[1], [0], [0], [1], [0, 0, 1, 1], [], []>} : vector<8x128xf32>, vector<128x384xf32>, vector<8x384xf32> -> vector<8x384xf32>
    %43 = arith.index_cast %c1_i32 : i32 to index
    %c0_15 = arith.constant 0 : index
    %c0_16 = arith.constant 0 : index
    %44 = vector.load %arg1[%43, %c0_15, %c0_16] : memref<8x8x384xf32, #tpu.memory_space<vmem>>, vector<1x8x384xf32>
    %45 = vector.shape_cast %44 : vector<1x8x384xf32> to vector<8x384xf32>
    %46 = vector.extract_strided_slice %45 {offsets = [0, 0], sizes = [8, 128], strides = [1, 1]} : vector<8x384xf32> to vector<8x128xf32>
    %47 = vector.extract_strided_slice %42 {offsets = [0, 0], sizes = [8, 128], strides = [1, 1]} : vector<8x384xf32> to vector<8x128xf32>
    %48 = arith.addf %46, %47 : vector<8x128xf32>
    %49 = arith.negf %48 : vector<8x128xf32>
    %50 = math.exp %49 : vector<8x128xf32>
    %cst_17 = arith.constant 1.000000e+00 : f32
    %51 = vector.broadcast %cst_17 : f32 to vector<8x128xf32>
    %52 = arith.addf %51, %50 : vector<8x128xf32>
    %53 = arith.divf %51, %52 : vector<8x128xf32>
    %54 = vector.extract_strided_slice %45 {offsets = [0, 128], sizes = [8, 128], strides = [1, 1]} : vector<8x384xf32> to vector<8x128xf32>
    %55 = vector.extract_strided_slice %42 {offsets = [0, 128], sizes = [8, 128], strides = [1, 1]} : vector<8x384xf32> to vector<8x128xf32>
    %56 = arith.addf %54, %55 : vector<8x128xf32>
    %57 = arith.negf %56 : vector<8x128xf32>
    %58 = math.exp %57 : vector<8x128xf32>
    %cst_18 = arith.constant 1.000000e+00 : f32
    %59 = vector.broadcast %cst_18 : f32 to vector<8x128xf32>
    %60 = arith.addf %59, %58 : vector<8x128xf32>
    %61 = arith.divf %59, %60 : vector<8x128xf32>
    %62 = vector.extract_strided_slice %45 {offsets = [0, 256], sizes = [8, 128], strides = [1, 1]} : vector<8x384xf32> to vector<8x128xf32>
    %63 = vector.extract_strided_slice %42 {offsets = [0, 256], sizes = [8, 128], strides = [1, 1]} : vector<8x384xf32> to vector<8x128xf32>
    %64 = vector.broadcast %4 : vector<1x128xf32> to vector<8x128xf32>
    %65 = arith.addf %63, %64 : vector<8x128xf32>
    %66 = arith.mulf %53, %65 : vector<8x128xf32>
    %67 = arith.addf %62, %66 : vector<8x128xf32>
    %68 = math.tanh %67 : vector<8x128xf32>
    %cst_19 = arith.constant 1.000000e+00 : f32
    %69 = vector.broadcast %cst_19 : f32 to vector<8x128xf32>
    %70 = arith.subf %69, %61 : vector<8x128xf32>
    %71 = arith.mulf %70, %68 : vector<8x128xf32>
    %72 = arith.mulf %61, %37 : vector<8x128xf32>
    %73 = arith.addf %71, %72 : vector<8x128xf32>
    %74 = arith.index_cast %c1_i32 : i32 to index
    %c0_20 = arith.constant 0 : index
    %c0_21 = arith.constant 0 : index
    %75 = vector.load %arg5[%74, %c0_20, %c0_21] : memref<8x8x128xf32, #tpu.memory_space<vmem>>, vector<1x8x128xf32>
    %76 = vector.shape_cast %75 : vector<1x8x128xf32> to vector<8x128xf32>
    %77 = vector.shape_cast %73 : vector<8x128xf32> to vector<1x8x128xf32>
    tpu.vector_store %arg5[%74, %c0_20, %c0_21], %77 {strides = array<i32>} : memref<8x8x128xf32, #tpu.memory_space<vmem>>, vector<1x8x128xf32>,
    %c2_i32 = arith.constant 2 : i32
    %cst_22 = arith.constant dense<0.000000e+00> : vector<8x384xf32>
    %78 = tpu.matmul %73, %3, %cst_22 {dimension_numbers = #tpu.dot_dimension_numbers<[1], [0], [0], [1], [0, 0, 1, 1], [], []>} : vector<8x128xf32>, vector<128x384xf32>, vector<8x384xf32> -> vector<8x384xf32>
    %79 = arith.index_cast %c2_i32 : i32 to index
    %c0_23 = arith.constant 0 : index
    %c0_24 = arith.constant 0 : index
    %80 = vector.load %arg1[%79, %c0_23, %c0_24] : memref<8x8x384xf32, #tpu.memory_space<vmem>>, vector<1x8x384xf32>
    %81 = vector.shape_cast %80 : vector<1x8x384xf32> to vector<8x384xf32>
    %82 = vector.extract_strided_slice %81 {offsets = [0, 0], sizes = [8, 128], strides = [1, 1]} : vector<8x384xf32> to vector<8x128xf32>
    %83 = vector.extract_strided_slice %78 {offsets = [0, 0], sizes = [8, 128], strides = [1, 1]} : vector<8x384xf32> to vector<8x128xf32>
    %84 = arith.addf %82, %83 : vector<8x128xf32>
    %85 = arith.negf %84 : vector<8x128xf32>
    %86 = math.exp %85 : vector<8x128xf32>
    %cst_25 = arith.constant 1.000000e+00 : f32
    %87 = vector.broadcast %cst_25 : f32 to vector<8x128xf32>
    %88 = arith.addf %87, %86 : vector<8x128xf32>
    %89 = arith.divf %87, %88 : vector<8x128xf32>
    %90 = vector.extract_strided_slice %81 {offsets = [0, 128], sizes = [8, 128], strides = [1, 1]} : vector<8x384xf32> to vector<8x128xf32>
    %91 = vector.extract_strided_slice %78 {offsets = [0, 128], sizes = [8, 128], strides = [1, 1]} : vector<8x384xf32> to vector<8x128xf32>
    %92 = arith.addf %90, %91 : vector<8x128xf32>
    %93 = arith.negf %92 : vector<8x128xf32>
    %94 = math.exp %93 : vector<8x128xf32>
    %cst_26 = arith.constant 1.000000e+00 : f32
    %95 = vector.broadcast %cst_26 : f32 to vector<8x128xf32>
    %96 = arith.addf %95, %94 : vector<8x128xf32>
    %97 = arith.divf %95, %96 : vector<8x128xf32>
    %98 = vector.extract_strided_slice %81 {offsets = [0, 256], sizes = [8, 128], strides = [1, 1]} : vector<8x384xf32> to vector<8x128xf32>
    %99 = vector.extract_strided_slice %78 {offsets = [0, 256], sizes = [8, 128], strides = [1, 1]} : vector<8x384xf32> to vector<8x128xf32>
    %100 = vector.broadcast %4 : vector<1x128xf32> to vector<8x128xf32>
    %101 = arith.addf %99, %100 : vector<8x128xf32>
    %102 = arith.mulf %89, %101 : vector<8x128xf32>
    %103 = arith.addf %98, %102 : vector<8x128xf32>
    %104 = math.tanh %103 : vector<8x128xf32>
    %cst_27 = arith.constant 1.000000e+00 : f32
    %105 = vector.broadcast %cst_27 : f32 to vector<8x128xf32>
    %106 = arith.subf %105, %97 : vector<8x128xf32>
    %107 = arith.mulf %106, %104 : vector<8x128xf32>
    %108 = arith.mulf %97, %73 : vector<8x128xf32>
    %109 = arith.addf %107, %108 : vector<8x128xf32>
    %110 = arith.index_cast %c2_i32 : i32 to index
    %c0_28 = arith.constant 0 : index
    %c0_29 = arith.constant 0 : index
    %111 = vector.load %arg5[%110, %c0_28, %c0_29] : memref<8x8x128xf32, #tpu.memory_space<vmem>>, vector<1x8x128xf32>
    %112 = vector.shape_cast %111 : vector<1x8x128xf32> to vector<8x128xf32>
    %113 = vector.shape_cast %109 : vector<8x128xf32> to vector<1x8x128xf32>
    tpu.vector_store %arg5[%110, %c0_28, %c0_29], %113 {strides = array<i32>} : memref<8x8x128xf32, #tpu.memory_space<vmem>>, vector<1x8x128xf32>,
    %c3_i32 = arith.constant 3 : i32
    %cst_30 = arith.constant dense<0.000000e+00> : vector<8x384xf32>
    %114 = tpu.matmul %109, %3, %cst_30 {dimension_numbers = #tpu.dot_dimension_numbers<[1], [0], [0], [1], [0, 0, 1, 1], [], []>} : vector<8x128xf32>, vector<128x384xf32>, vector<8x384xf32> -> vector<8x384xf32>
    %115 = arith.index_cast %c3_i32 : i32 to index
    %c0_31 = arith.constant 0 : index
    %c0_32 = arith.constant 0 : index
    %116 = vector.load %arg1[%115, %c0_31, %c0_32] : memref<8x8x384xf32, #tpu.memory_space<vmem>>, vector<1x8x384xf32>
    %117 = vector.shape_cast %116 : vector<1x8x384xf32> to vector<8x384xf32>
    %118 = vector.extract_strided_slice %117 {offsets = [0, 0], sizes = [8, 128], strides = [1, 1]} : vector<8x384xf32> to vector<8x128xf32>
    %119 = vector.extract_strided_slice %114 {offsets = [0, 0], sizes = [8, 128], strides = [1, 1]} : vector<8x384xf32> to vector<8x128xf32>
    %120 = arith.addf %118, %119 : vector<8x128xf32>
    %121 = arith.negf %120 : vector<8x128xf32>
    %122 = math.exp %121 : vector<8x128xf32>
    %cst_33 = arith.constant 1.000000e+00 : f32
    %123 = vector.broadcast %cst_33 : f32 to vector<8x128xf32>
    %124 = arith.addf %123, %122 : vector<8x128xf32>
    %125 = arith.divf %123, %124 : vector<8x128xf32>
    %126 = vector.extract_strided_slice %117 {offsets = [0, 128], sizes = [8, 128], strides = [1, 1]} : vector<8x384xf32> to vector<8x128xf32>
    %127 = vector.extract_strided_slice %114 {offsets = [0, 128], sizes = [8, 128], strides = [1, 1]} : vector<8x384xf32> to vector<8x128xf32>
    %128 = arith.addf %126, %127 : vector<8x128xf32>
    %129 = arith.negf %128 : vector<8x128xf32>
    %130 = math.exp %129 : vector<8x128xf32>
    %cst_34 = arith.constant 1.000000e+00 : f32
    %131 = vector.broadcast %cst_34 : f32 to vector<8x128xf32>
    %132 = arith.addf %131, %130 : vector<8x128xf32>
    %133 = arith.divf %131, %132 : vector<8x128xf32>
    %134 = vector.extract_strided_slice %117 {offsets = [0, 256], sizes = [8, 128], strides = [1, 1]} : vector<8x384xf32> to vector<8x128xf32>
    %135 = vector.extract_strided_slice %114 {offsets = [0, 256], sizes = [8, 128], strides = [1, 1]} : vector<8x384xf32> to vector<8x128xf32>
    %136 = vector.broadcast %4 : vector<1x128xf32> to vector<8x128xf32>
    %137 = arith.addf %135, %136 : vector<8x128xf32>
    %138 = arith.mulf %125, %137 : vector<8x128xf32>
    %139 = arith.addf %134, %138 : vector<8x128xf32>
    %140 = math.tanh %139 : vector<8x128xf32>
    %cst_35 = arith.constant 1.000000e+00 : f32
    %141 = vector.broadcast %cst_35 : f32 to vector<8x128xf32>
    %142 = arith.subf %141, %133 : vector<8x128xf32>
    %143 = arith.mulf %142, %140 : vector<8x128xf32>
    %144 = arith.mulf %133, %109 : vector<8x128xf32>
    %145 = arith.addf %143, %144 : vector<8x128xf32>
    %146 = arith.index_cast %c3_i32 : i32 to index
    %c0_36 = arith.constant 0 : index
    %c0_37 = arith.constant 0 : index
    %147 = vector.load %arg5[%146, %c0_36, %c0_37] : memref<8x8x128xf32, #tpu.memory_space<vmem>>, vector<1x8x128xf32>
    %148 = vector.shape_cast %147 : vector<1x8x128xf32> to vector<8x128xf32>
    %149 = vector.shape_cast %145 : vector<8x128xf32> to vector<1x8x128xf32>
    tpu.vector_store %arg5[%146, %c0_36, %c0_37], %149 {strides = array<i32>} : memref<8x8x128xf32, #tpu.memory_space<vmem>>, vector<1x8x128xf32>,
    %c4_i32 = arith.constant 4 : i32
    %cst_38 = arith.constant dense<0.000000e+00> : vector<8x384xf32>
    %150 = tpu.matmul %145, %3, %cst_38 {dimension_numbers = #tpu.dot_dimension_numbers<[1], [0], [0], [1], [0, 0, 1, 1], [], []>} : vector<8x128xf32>, vector<128x384xf32>, vector<8x384xf32> -> vector<8x384xf32>
    %151 = arith.index_cast %c4_i32 : i32 to index
    %c0_39 = arith.constant 0 : index
    %c0_40 = arith.constant 0 : index
    %152 = vector.load %arg1[%151, %c0_39, %c0_40] : memref<8x8x384xf32, #tpu.memory_space<vmem>>, vector<1x8x384xf32>
    %153 = vector.shape_cast %152 : vector<1x8x384xf32> to vector<8x384xf32>
    %154 = vector.extract_strided_slice %153 {offsets = [0, 0], sizes = [8, 128], strides = [1, 1]} : vector<8x384xf32> to vector<8x128xf32>
    %155 = vector.extract_strided_slice %150 {offsets = [0, 0], sizes = [8, 128], strides = [1, 1]} : vector<8x384xf32> to vector<8x128xf32>
    %156 = arith.addf %154, %155 : vector<8x128xf32>
    %157 = arith.negf %156 : vector<8x128xf32>
    %158 = math.exp %157 : vector<8x128xf32>
    %cst_41 = arith.constant 1.000000e+00 : f32
    %159 = vector.broadcast %cst_41 : f32 to vector<8x128xf32>
    %160 = arith.addf %159, %158 : vector<8x128xf32>
    %161 = arith.divf %159, %160 : vector<8x128xf32>
    %162 = vector.extract_strided_slice %153 {offsets = [0, 128], sizes = [8, 128], strides = [1, 1]} : vector<8x384xf32> to vector<8x128xf32>
    %163 = vector.extract_strided_slice %150 {offsets = [0, 128], sizes = [8, 128], strides = [1, 1]} : vector<8x384xf32> to vector<8x128xf32>
    %164 = arith.addf %162, %163 : vector<8x128xf32>
    %165 = arith.negf %164 : vector<8x128xf32>
    %166 = math.exp %165 : vector<8x128xf32>
    %cst_42 = arith.constant 1.000000e+00 : f32
    %167 = vector.broadcast %cst_42 : f32 to vector<8x128xf32>
    %168 = arith.addf %167, %166 : vector<8x128xf32>
    %169 = arith.divf %167, %168 : vector<8x128xf32>
    %170 = vector.extract_strided_slice %153 {offsets = [0, 256], sizes = [8, 128], strides = [1, 1]} : vector<8x384xf32> to vector<8x128xf32>
    %171 = vector.extract_strided_slice %150 {offsets = [0, 256], sizes = [8, 128], strides = [1, 1]} : vector<8x384xf32> to vector<8x128xf32>
    %172 = vector.broadcast %4 : vector<1x128xf32> to vector<8x128xf32>
    %173 = arith.addf %171, %172 : vector<8x128xf32>
    %174 = arith.mulf %161, %173 : vector<8x128xf32>
    %175 = arith.addf %170, %174 : vector<8x128xf32>
    %176 = math.tanh %175 : vector<8x128xf32>
    %cst_43 = arith.constant 1.000000e+00 : f32
    %177 = vector.broadcast %cst_43 : f32 to vector<8x128xf32>
    %178 = arith.subf %177, %169 : vector<8x128xf32>
    %179 = arith.mulf %178, %176 : vector<8x128xf32>
    %180 = arith.mulf %169, %145 : vector<8x128xf32>
    %181 = arith.addf %179, %180 : vector<8x128xf32>
    %182 = arith.index_cast %c4_i32 : i32 to index
    %c0_44 = arith.constant 0 : index
    %c0_45 = arith.constant 0 : index
    %183 = vector.load %arg5[%182, %c0_44, %c0_45] : memref<8x8x128xf32, #tpu.memory_space<vmem>>, vector<1x8x128xf32>
    %184 = vector.shape_cast %183 : vector<1x8x128xf32> to vector<8x128xf32>
    %185 = vector.shape_cast %181 : vector<8x128xf32> to vector<1x8x128xf32>
    tpu.vector_store %arg5[%182, %c0_44, %c0_45], %185 {strides = array<i32>} : memref<8x8x128xf32, #tpu.memory_space<vmem>>, vector<1x8x128xf32>,
    %c5_i32 = arith.constant 5 : i32
    %cst_46 = arith.constant dense<0.000000e+00> : vector<8x384xf32>
    %186 = tpu.matmul %181, %3, %cst_46 {dimension_numbers = #tpu.dot_dimension_numbers<[1], [0], [0], [1], [0, 0, 1, 1], [], []>} : vector<8x128xf32>, vector<128x384xf32>, vector<8x384xf32> -> vector<8x384xf32>
    %187 = arith.index_cast %c5_i32 : i32 to index
    %c0_47 = arith.constant 0 : index
    %c0_48 = arith.constant 0 : index
    %188 = vector.load %arg1[%187, %c0_47, %c0_48] : memref<8x8x384xf32, #tpu.memory_space<vmem>>, vector<1x8x384xf32>
    %189 = vector.shape_cast %188 : vector<1x8x384xf32> to vector<8x384xf32>
    %190 = vector.extract_strided_slice %189 {offsets = [0, 0], sizes = [8, 128], strides = [1, 1]} : vector<8x384xf32> to vector<8x128xf32>
    %191 = vector.extract_strided_slice %186 {offsets = [0, 0], sizes = [8, 128], strides = [1, 1]} : vector<8x384xf32> to vector<8x128xf32>
    %192 = arith.addf %190, %191 : vector<8x128xf32>
    %193 = arith.negf %192 : vector<8x128xf32>
    %194 = math.exp %193 : vector<8x128xf32>
    %cst_49 = arith.constant 1.000000e+00 : f32
    %195 = vector.broadcast %cst_49 : f32 to vector<8x128xf32>
    %196 = arith.addf %195, %194 : vector<8x128xf32>
    %197 = arith.divf %195, %196 : vector<8x128xf32>
    %198 = vector.extract_strided_slice %189 {offsets = [0, 128], sizes = [8, 128], strides = [1, 1]} : vector<8x384xf32> to vector<8x128xf32>
    %199 = vector.extract_strided_slice %186 {offsets = [0, 128], sizes = [8, 128], strides = [1, 1]} : vector<8x384xf32> to vector<8x128xf32>
    %200 = arith.addf %198, %199 : vector<8x128xf32>
    %201 = arith.negf %200 : vector<8x128xf32>
    %202 = math.exp %201 : vector<8x128xf32>
    %cst_50 = arith.constant 1.000000e+00 : f32
    %203 = vector.broadcast %cst_50 : f32 to vector<8x128xf32>
    %204 = arith.addf %203, %202 : vector<8x128xf32>
    %205 = arith.divf %203, %204 : vector<8x128xf32>
    %206 = vector.extract_strided_slice %189 {offsets = [0, 256], sizes = [8, 128], strides = [1, 1]} : vector<8x384xf32> to vector<8x128xf32>
    %207 = vector.extract_strided_slice %186 {offsets = [0, 256], sizes = [8, 128], strides = [1, 1]} : vector<8x384xf32> to vector<8x128xf32>
    %208 = vector.broadcast %4 : vector<1x128xf32> to vector<8x128xf32>
    %209 = arith.addf %207, %208 : vector<8x128xf32>
    %210 = arith.mulf %197, %209 : vector<8x128xf32>
    %211 = arith.addf %206, %210 : vector<8x128xf32>
    %212 = math.tanh %211 : vector<8x128xf32>
    %cst_51 = arith.constant 1.000000e+00 : f32
    %213 = vector.broadcast %cst_51 : f32 to vector<8x128xf32>
    %214 = arith.subf %213, %205 : vector<8x128xf32>
    %215 = arith.mulf %214, %212 : vector<8x128xf32>
    %216 = arith.mulf %205, %181 : vector<8x128xf32>
    %217 = arith.addf %215, %216 : vector<8x128xf32>
    %218 = arith.index_cast %c5_i32 : i32 to index
    %c0_52 = arith.constant 0 : index
    %c0_53 = arith.constant 0 : index
    %219 = vector.load %arg5[%218, %c0_52, %c0_53] : memref<8x8x128xf32, #tpu.memory_space<vmem>>, vector<1x8x128xf32>
    %220 = vector.shape_cast %219 : vector<1x8x128xf32> to vector<8x128xf32>
    %221 = vector.shape_cast %217 : vector<8x128xf32> to vector<1x8x128xf32>
    tpu.vector_store %arg5[%218, %c0_52, %c0_53], %221 {strides = array<i32>} : memref<8x8x128xf32, #tpu.memory_space<vmem>>, vector<1x8x128xf32>,
    %c6_i32 = arith.constant 6 : i32
    %cst_54 = arith.constant dense<0.000000e+00> : vector<8x384xf32>
    %222 = tpu.matmul %217, %3, %cst_54 {dimension_numbers = #tpu.dot_dimension_numbers<[1], [0], [0], [1], [0, 0, 1, 1], [], []>} : vector<8x128xf32>, vector<128x384xf32>, vector<8x384xf32> -> vector<8x384xf32>
    %223 = arith.index_cast %c6_i32 : i32 to index
    %c0_55 = arith.constant 0 : index
    %c0_56 = arith.constant 0 : index
    %224 = vector.load %arg1[%223, %c0_55, %c0_56] : memref<8x8x384xf32, #tpu.memory_space<vmem>>, vector<1x8x384xf32>
    %225 = vector.shape_cast %224 : vector<1x8x384xf32> to vector<8x384xf32>
    %226 = vector.extract_strided_slice %225 {offsets = [0, 0], sizes = [8, 128], strides = [1, 1]} : vector<8x384xf32> to vector<8x128xf32>
    %227 = vector.extract_strided_slice %222 {offsets = [0, 0], sizes = [8, 128], strides = [1, 1]} : vector<8x384xf32> to vector<8x128xf32>
    %228 = arith.addf %226, %227 : vector<8x128xf32>
    %229 = arith.negf %228 : vector<8x128xf32>
    %230 = math.exp %229 : vector<8x128xf32>
    %cst_57 = arith.constant 1.000000e+00 : f32
    %231 = vector.broadcast %cst_57 : f32 to vector<8x128xf32>
    %232 = arith.addf %231, %230 : vector<8x128xf32>
    %233 = arith.divf %231, %232 : vector<8x128xf32>
    %234 = vector.extract_strided_slice %225 {offsets = [0, 128], sizes = [8, 128], strides = [1, 1]} : vector<8x384xf32> to vector<8x128xf32>
    %235 = vector.extract_strided_slice %222 {offsets = [0, 128], sizes = [8, 128], strides = [1, 1]} : vector<8x384xf32> to vector<8x128xf32>
    %236 = arith.addf %234, %235 : vector<8x128xf32>
    %237 = arith.negf %236 : vector<8x128xf32>
    %238 = math.exp %237 : vector<8x128xf32>
    %cst_58 = arith.constant 1.000000e+00 : f32
    %239 = vector.broadcast %cst_58 : f32 to vector<8x128xf32>
    %240 = arith.addf %239, %238 : vector<8x128xf32>
    %241 = arith.divf %239, %240 : vector<8x128xf32>
    %242 = vector.extract_strided_slice %225 {offsets = [0, 256], sizes = [8, 128], strides = [1, 1]} : vector<8x384xf32> to vector<8x128xf32>
    %243 = vector.extract_strided_slice %222 {offsets = [0, 256], sizes = [8, 128], strides = [1, 1]} : vector<8x384xf32> to vector<8x128xf32>
    %244 = vector.broadcast %4 : vector<1x128xf32> to vector<8x128xf32>
    %245 = arith.addf %243, %244 : vector<8x128xf32>
    %246 = arith.mulf %233, %245 : vector<8x128xf32>
    %247 = arith.addf %242, %246 : vector<8x128xf32>
    %248 = math.tanh %247 : vector<8x128xf32>
    %cst_59 = arith.constant 1.000000e+00 : f32
    %249 = vector.broadcast %cst_59 : f32 to vector<8x128xf32>
    %250 = arith.subf %249, %241 : vector<8x128xf32>
    %251 = arith.mulf %250, %248 : vector<8x128xf32>
    %252 = arith.mulf %241, %217 : vector<8x128xf32>
    %253 = arith.addf %251, %252 : vector<8x128xf32>
    %254 = arith.index_cast %c6_i32 : i32 to index
    %c0_60 = arith.constant 0 : index
    %c0_61 = arith.constant 0 : index
    %255 = vector.load %arg5[%254, %c0_60, %c0_61] : memref<8x8x128xf32, #tpu.memory_space<vmem>>, vector<1x8x128xf32>
    %256 = vector.shape_cast %255 : vector<1x8x128xf32> to vector<8x128xf32>
    %257 = vector.shape_cast %253 : vector<8x128xf32> to vector<1x8x128xf32>
    tpu.vector_store %arg5[%254, %c0_60, %c0_61], %257 {strides = array<i32>} : memref<8x8x128xf32, #tpu.memory_space<vmem>>, vector<1x8x128xf32>,
    %c7_i32 = arith.constant 7 : i32
    %cst_62 = arith.constant dense<0.000000e+00> : vector<8x384xf32>
    %258 = tpu.matmul %253, %3, %cst_62 {dimension_numbers = #tpu.dot_dimension_numbers<[1], [0], [0], [1], [0, 0, 1, 1], [], []>} : vector<8x128xf32>, vector<128x384xf32>, vector<8x384xf32> -> vector<8x384xf32>
    %259 = arith.index_cast %c7_i32 : i32 to index
    %c0_63 = arith.constant 0 : index
    %c0_64 = arith.constant 0 : index
    %260 = vector.load %arg1[%259, %c0_63, %c0_64] : memref<8x8x384xf32, #tpu.memory_space<vmem>>, vector<1x8x384xf32>
    %261 = vector.shape_cast %260 : vector<1x8x384xf32> to vector<8x384xf32>
    %262 = vector.extract_strided_slice %261 {offsets = [0, 0], sizes = [8, 128], strides = [1, 1]} : vector<8x384xf32> to vector<8x128xf32>
    %263 = vector.extract_strided_slice %258 {offsets = [0, 0], sizes = [8, 128], strides = [1, 1]} : vector<8x384xf32> to vector<8x128xf32>
    %264 = arith.addf %262, %263 : vector<8x128xf32>
    %265 = arith.negf %264 : vector<8x128xf32>
    %266 = math.exp %265 : vector<8x128xf32>
    %cst_65 = arith.constant 1.000000e+00 : f32
    %267 = vector.broadcast %cst_65 : f32 to vector<8x128xf32>
    %268 = arith.addf %267, %266 : vector<8x128xf32>
    %269 = arith.divf %267, %268 : vector<8x128xf32>
    %270 = vector.extract_strided_slice %261 {offsets = [0, 128], sizes = [8, 128], strides = [1, 1]} : vector<8x384xf32> to vector<8x128xf32>
    %271 = vector.extract_strided_slice %258 {offsets = [0, 128], sizes = [8, 128], strides = [1, 1]} : vector<8x384xf32> to vector<8x128xf32>
    %272 = arith.addf %270, %271 : vector<8x128xf32>
    %273 = arith.negf %272 : vector<8x128xf32>
    %274 = math.exp %273 : vector<8x128xf32>
    %cst_66 = arith.constant 1.000000e+00 : f32
    %275 = vector.broadcast %cst_66 : f32 to vector<8x128xf32>
    %276 = arith.addf %275, %274 : vector<8x128xf32>
    %277 = arith.divf %275, %276 : vector<8x128xf32>
    %278 = vector.extract_strided_slice %261 {offsets = [0, 256], sizes = [8, 128], strides = [1, 1]} : vector<8x384xf32> to vector<8x128xf32>
    %279 = vector.extract_strided_slice %258 {offsets = [0, 256], sizes = [8, 128], strides = [1, 1]} : vector<8x384xf32> to vector<8x128xf32>
    %280 = vector.broadcast %4 : vector<1x128xf32> to vector<8x128xf32>
    %281 = arith.addf %279, %280 : vector<8x128xf32>
    %282 = arith.mulf %269, %281 : vector<8x128xf32>
    %283 = arith.addf %278, %282 : vector<8x128xf32>
    %284 = math.tanh %283 : vector<8x128xf32>
    %cst_67 = arith.constant 1.000000e+00 : f32
    %285 = vector.broadcast %cst_67 : f32 to vector<8x128xf32>
    %286 = arith.subf %285, %277 : vector<8x128xf32>
    %287 = arith.mulf %286, %284 : vector<8x128xf32>
    %288 = arith.mulf %277, %253 : vector<8x128xf32>
    %289 = arith.addf %287, %288 : vector<8x128xf32>
    %290 = arith.index_cast %c7_i32 : i32 to index
    %c0_68 = arith.constant 0 : index
    %c0_69 = arith.constant 0 : index
    %291 = vector.load %arg5[%290, %c0_68, %c0_69] : memref<8x8x128xf32, #tpu.memory_space<vmem>>, vector<1x8x128xf32>
    %292 = vector.shape_cast %291 : vector<1x8x128xf32> to vector<8x128xf32>
    %293 = vector.shape_cast %289 : vector<8x128xf32> to vector<1x8x128xf32>
    tpu.vector_store %arg5[%290, %c0_68, %c0_69], %293 {strides = array<i32>} : memref<8x8x128xf32, #tpu.memory_space<vmem>>, vector<1x8x128xf32>,
    %c8_i32 = arith.constant 8 : i32
    %c0_70 = arith.constant 0 : index
    %c0_71 = arith.constant 0 : index
    %294 = vector.load %arg6[%c0_70, %c0_71] : memref<8x128xf32, #tpu.memory_space<vmem>>, vector<8x128xf32>
    tpu.vector_store %arg6[%c0_70, %c0_71], %289 {strides = array<i32>} : memref<8x128xf32, #tpu.memory_space<vmem>>, vector<8x128xf32>,
    return
  }
  func.func @transform_0(%arg0: i32) -> (i32, i32, i32) {
    %c0_i32 = arith.constant 0 : i32
    %c0_i32_0 = arith.constant 0 : i32
    %c0_i32_1 = arith.constant 0 : i32
    return %arg0, %c0_i32, %c0_i32_0 : i32, i32, i32
  }
  func.func @transform_1(%arg0: i32) -> (i32, i32) {
    %c0_i32 = arith.constant 0 : i32
    %c0_i32_0 = arith.constant 0 : i32
    %c0_i32_1 = arith.constant 0 : i32
    return %c0_i32, %c0_i32_0 : i32, i32
  }
  func.func @transform_2(%arg0: i32) -> (i32, i32) {
    %c0_i32 = arith.constant 0 : i32
    %c0_i32_0 = arith.constant 0 : i32
    %c0_i32_1 = arith.constant 0 : i32
    return %c0_i32, %c0_i32_0 : i32, i32
  }
  func.func @transform_3(%arg0: i32) -> (i32, i32) {
    %c0_i32 = arith.constant 0 : i32
    %c0_i32_0 = arith.constant 0 : i32
    %c0_i32_1 = arith.constant 0 : i32
    return %c0_i32, %c0_i32_0 : i32, i32
  }
  func.func @transform_4(%arg0: i32) -> (i32, i32, i32) {
    %c0_i32 = arith.constant 0 : i32
    %c0_i32_0 = arith.constant 0 : i32
    %c0_i32_1 = arith.constant 0 : i32
    return %arg0, %c0_i32, %c0_i32_0 : i32, i32, i32
  }
}

</mosaic_0001>

<llo_original>
// kernel: my_gru_forward.2
$region0: #{my_gru_forward.2}
  #allocation0 [shape = 'u32[]', space=smem, size = 0x4, offset = 0x4, fixed_abs, tag = 'smem constant byte address 0x4 - core index']
  #allocation1 [shape = 'u32[144,128]{1,0:T(1,128)}', space=vmem, size = 0x12000, scoped, tag = 'internal scratch']
  %s0 = inlined_call_operand.vmem [shape: f32[128,16], index: 0, kind: input, shape index: {}]
  %s1 = inlined_call_operand.vmem [shape: f32[16,384], index: 1, kind: input, shape index: {}]
  %s2 = inlined_call_operand.vmem [shape: f32[1,384], index: 2, kind: input, shape index: {}]
  %s3 = inlined_call_operand.vmem [shape: f32[128,384], index: 3, kind: output, shape index: {}]
  %s4 = sld [smem:[#allocation0]]
  $region22: #{my_gru_forward.2} parent=0
    _
  %s6 = ssub.s32 1, %s4
  %s7 = scalar_select 0, %s6, %s4
  // Predicated region
  $region2: #{my_gru_forward.2} parent=0 // pred_check
    _
  $region3: #{my_gru_forward.2} parent=0 // pred_check_branch
    %9 = sbr.rel (0) target = $region5
  $region4: #{my_gru_forward.2} parent=0 // pred_region
    _
  $region5: #{my_gru_forward.2} parent=0 // pred_fallthru
    _
  // Predicated region
  $region6: #{my_gru_forward.2} parent=0 // pred_check
    _
  $region7: #{my_gru_forward.2} parent=0 // pred_check_branch
    %11 = sbr.rel (0) target = $region9
  $region8: #{my_gru_forward.2} parent=0 // pred_region
    _
  $region9: #{my_gru_forward.2} parent=0 // pred_fallthru
    _
  // Predicated region
  $region10: #{my_gru_forward.2} parent=0 // pred_check
    _
  $region11: #{my_gru_forward.2} parent=0 // pred_check_branch
    %13 = sbr.rel (0) target = $region13
  $region12: #{my_gru_forward.2} parent=0 // pred_region
    _
  $region13: #{my_gru_forward.2} parent=0 // pred_fallthru
    _
  %v14 = vld [vmem:[%s0] sm:$0xff]
  %v15 = vld [vmem:[%s0 + $0x8] sm:$0xff]
  %v16 = vld [vmem:[%s0 + $0x10] sm:$0xff]
  %v17 = vld [vmem:[%s0 + $0x18] sm:$0xff]
  %v18 = vld [vmem:[%s0 + $0x20] sm:$0xff]
  %v19 = vld [vmem:[%s0 + $0x28] sm:$0xff]
  %v20 = vld [vmem:[%s0 + $0x30] sm:$0xff]
  %v21 = vld [vmem:[%s0 + $0x38] sm:$0xff]
  %v22 = vld [vmem:[%s0 + $0x40] sm:$0xff]
  %v23 = vld [vmem:[%s0 + $0x48] sm:$0xff]
  %v24 = vld [vmem:[%s0 + $0x50] sm:$0xff]
  %v25 = vld [vmem:[%s0 + $0x58] sm:$0xff]
  %v26 = vld [vmem:[%s0 + $0x60] sm:$0xff]
  %v27 = vld [vmem:[%s0 + $0x68] sm:$0xff]
  %v28 = vld [vmem:[%s0 + $0x70] sm:$0xff]
  %v29 = vld [vmem:[%s0 + $0x78] sm:$0xff]
  %v30 = vld [vmem:[%s1] sm:$0xff]
  %v31 = vld [vmem:[%s1 + $0x8] sm:$0xff]
  %v32 = vld [vmem:[%s1 + $0x10] sm:$0xff]
  %v33 = vld [vmem:[%s1 + $0x18] sm:$0xff]
  %v34 = vld [vmem:[%s1 + $0x20] sm:$0xff]
  %v35 = vld [vmem:[%s1 + $0x28] sm:$0xff]
  %v36 = vld [vmem:[%s2] sm:$0x7]
  %v38 = vlaneseq
  %v39 = vshrl.u32 %v38, 7
  %v40 = vsub.s32 0, %v39
  %v41 = vrot.slane %v36, %v40
  %v42 = vlaneseq
  %v43 = vshrl.u32 %v42, 7
  %v44 = vsub.s32 1, %v43
  %v45 = vrot.slane %v36, %v44
  %v46 = vlaneseq
  %v47 = vshrl.u32 %v46, 7
  %v48 = vsub.s32 2, %v47
  %v49 = vrot.slane %v36, %v48
  %vm53 = vcmask 130048
  %v55 = vsel %vm53, %v14, 0
  %v58 = vsel %vm53, %v15, 0
  %v61 = vsel %vm53, %v16, 0
  %v64 = vsel %vm53, %v17, 0
  %v67 = vsel %vm53, %v18, 0
  %v70 = vsel %vm53, %v19, 0
  %v73 = vsel %vm53, %v20, 0
  %v76 = vsel %vm53, %v21, 0
  %v79 = vsel %vm53, %v22, 0
  %v82 = vsel %vm53, %v23, 0
  %v85 = vsel %vm53, %v24, 0
  %v88 = vsel %vm53, %v25, 0
  %v91 = vsel %vm53, %v26, 0
  %v94 = vsel %vm53, %v27, 0
  %v97 = vsel %vm53, %v28, 0
  %v100 = vsel %vm53, %v29, 0
  %102 = vmatprep.subr.mxu0 %v31
  %103 = vmatpush1.msra.mxu0 %v30
  %104 = vmatprep.subr.mxu0 %v34
  %105 = vmatpush1.msra.mxu0 %v33
  %106 = vmatprep.subr.mxu0 0.0
  %107 = vmatpush1.msra.mxu0 0.0
  %108 = vmatprep.subr.mxu0 0.0
  %109 = vmatpush1.msra.mxu0 0.0
  %110 = vmatprep.subr.mxu0 0.0
  %111 = vmatpush1.msra.mxu0 0.0
  %112 = vmatprep.subr.mxu0 0.0
  %113 = vmatpush1.msra.mxu0 0.0
  %114 = vmatprep.subr.mxu0 0.0
  %115 = vmatpush1.msra.mxu0 0.0
  %116 = vmatprep.subr.mxu0 0.0
  %117 = vmatpush1.msra.mxu0 0.0
  %118 = vmatprep.subr.mxu0 0.0
  %119 = vmatpush1.msra.mxu0 0.0
  %120 = vmatprep.subr.mxu0 0.0
  %121 = vmatpush1.msra.mxu0 0.0
  %122 = vmatprep.subr.mxu0 0.0
  %123 = vmatpush1.msra.mxu0 0.0
  %124 = vmatprep.subr.mxu0 0.0
  %125 = vmatpush1.msra.mxu0 0.0
  %126 = vmatprep.subr.mxu0 0.0
  %127 = vmatpush1.msra.mxu0 0.0
  %128 = vmatprep.subr.mxu0 0.0
  %129 = vmatpush1.msra.mxu0 0.0
  %130 = vmatprep.subr.mxu0 0.0
  %131 = vmatpush1.msra.mxu0 0.0
  %132 = vmatprep.subr.mxu0 0.0
  %133 = vmatpush1.msra.mxu0 0.0
  %134 = vmatprep.subr.mxu0 0.0
  %135 = vmatpush1.msra.mxu0 0.0
  %136 = vmatprep.subr.mxu0 0.0
  %137 = vmatpush1.msra.mxu0 0.0
  %138 = vmatprep.subr.mxu0 0.0
  %139 = vmatpush1.msra.mxu0 0.0
  %140 = vmatprep.subr.mxu0 0.0
  %141 = vmatpush1.msra.mxu0 0.0
  %142 = vmatprep.subr.mxu0 0.0
  %143 = vmatpush1.msra.mxu0 0.0
  %144 = vmatprep.subr.mxu0 0.0
  %145 = vmatpush1.msra.mxu0 0.0
  %146 = vmatprep.subr.mxu0 0.0
  %147 = vmatpush1.msra.mxu0 0.0
  %148 = vmatprep.subr.mxu0 0.0
  %149 = vmatpush1.msra.mxu0 0.0
  %150 = vmatprep.subr.mxu0 0.0
  %151 = vmatpush1.msra.mxu0 0.0
  %152 = vmatprep.subr.mxu0 0.0
  %153 = vmatpush1.msra.mxu0 0.0
  %154 = vmatprep.subr.mxu0 0.0
  %155 = vmatpush1.msra.mxu0 0.0
  %156 = vmatprep.subr.mxu0 0.0
  %157 = vmatpush1.msra.mxu0 0.0
  %158 = vmatprep.subr.mxu0 0.0
  %159 = vmatpush1.msra.mxu0 0.0
  %160 = vmatprep.subr.mxu0 0.0
  %161 = vmatpush1.msra.mxu0 0.0
  %162 = vmatprep.subr.mxu0 0.0
  %163 = vmatpush1.msra.mxu0 0.0
  %164 = vmatprep.subr.mxu0 0.0
  %165 = vmatpush1.msra.mxu0 0.0
  %166 = vmatprep.mubr.f32.mxu0 0.0
  %167 = vmatmul.mubr.f32.gmra.mrb[0].mxu0 %v55
  %v168 = vpop.f32.mrb[0].mxu0
  %v169 = vadd.f32 %v41, %v168
  %v170 = vpop.f32.mrb[0].mxu0
  %v171 = vadd.f32 %v45, %v170
  %172 = vmatprep.mubr.f32.mxu0 0.0
  %173 = vmatmul.mubr.f32.gmra.mrb[0].mxu0 %v58
  %v174 = vpop.f32.mrb[0].mxu0
  %v175 = vadd.f32 %v41, %v174
  %v176 = vpop.f32.mrb[0].mxu0
  %v177 = vadd.f32 %v45, %v176
  %178 = vmatprep.mubr.f32.mxu0 0.0
  %179 = vmatmul.mubr.f32.gmra.mrb[0].mxu0 %v61
  %v180 = vpop.f32.mrb[0].mxu0
  %v181 = vadd.f32 %v41, %v180
  %v182 = vpop.f32.mrb[0].mxu0
  %v183 = vadd.f32 %v45, %v182
  %184 = vmatprep.mubr.f32.mxu0 0.0
  %185 = vmatmul.mubr.f32.gmra.mrb[0].mxu0 %v64
  %v186 = vpop.f32.mrb[0].mxu0
  %v187 = vadd.f32 %v41, %v186
  %v188 = vpop.f32.mrb[0].mxu0
  %v189 = vadd.f32 %v45, %v188
  %190 = vmatprep.mubr.f32.mxu0 0.0
  %191 = vmatmul.mubr.f32.gmra.mrb[0].mxu0 %v67
  %v192 = vpop.f32.mrb[0].mxu0
  %v193 = vadd.f32 %v41, %v192
  %v194 = vpop.f32.mrb[0].mxu0
  %v195 = vadd.f32 %v45, %v194
  %196 = vmatprep.mubr.f32.mxu0 0.0
  %197 = vmatmul.mubr.f32.gmra.mrb[0].mxu0 %v70
  %v198 = vpop.f32.mrb[0].mxu0
  %v199 = vadd.f32 %v41, %v198
  %v200 = vpop.f32.mrb[0].mxu0
  %v201 = vadd.f32 %v45, %v200
  %202 = vmatprep.mubr.f32.mxu0 0.0
  %203 = vmatmul.mubr.f32.gmra.mrb[0].mxu0 %v73
  %v204 = vpop.f32.mrb[0].mxu0
  %v205 = vadd.f32 %v41, %v204
  %v206 = vpop.f32.mrb[0].mxu0
  %v207 = vadd.f32 %v45, %v206
  %208 = vmatprep.mubr.f32.mxu0 0.0
  %209 = vmatmul.mubr.f32.gmra.mrb[0].mxu0 %v76
  %v210 = vpop.f32.mrb[0].mxu0
  %v211 = vadd.f32 %v41, %v210
  %v212 = vpop.f32.mrb[0].mxu0
  %v213 = vadd.f32 %v45, %v212
  %214 = vmatprep.mubr.f32.mxu0 0.0
  %215 = vmatmul.mubr.f32.gmra.mrb[0].mxu0 %v79
  %v216 = vpop.f32.mrb[0].mxu0
  %v217 = vadd.f32 %v41, %v216
  %v218 = vpop.f32.mrb[0].mxu0
  %v219 = vadd.f32 %v45, %v218
  %220 = vmatprep.mubr.f32.mxu0 0.0
  %221 = vmatmul.mubr.f32.gmra.mrb[0].mxu0 %v82
  %v222 = vpop.f32.mrb[0].mxu0
  %v223 = vadd.f32 %v41, %v222
  %v224 = vpop.f32.mrb[0].mxu0
  %v225 = vadd.f32 %v45, %v224
  %226 = vmatprep.mubr.f32.mxu0 0.0
  %227 = vmatmul.mubr.f32.gmra.mrb[0].mxu0 %v85
  %v228 = vpop.f32.mrb[0].mxu0
  %v229 = vadd.f32 %v41, %v228
  %v230 = vpop.f32.mrb[0].mxu0
  %v231 = vadd.f32 %v45, %v230
  %232 = vmatprep.mubr.f32.mxu0 0.0
  %233 = vmatmul.mubr.f32.gmra.mrb[0].mxu0 %v88
  %v234 = vpop.f32.mrb[0].mxu0
  %v235 = vadd.f32 %v41, %v234
  %v236 = vpop.f32.mrb[0].mxu0
  %v237 = vadd.f32 %v45, %v236
  %238 = vmatprep.mubr.f32.mxu0 0.0
  %239 = vmatmul.mubr.f32.gmra.mrb[0].mxu0 %v91
  %v240 = vpop.f32.mrb[0].mxu0
  %v241 = vadd.f32 %v41, %v240
  %v242 = vpop.f32.mrb[0].mxu0
  %v243 = vadd.f32 %v45, %v242
  %244 = vmatprep.mubr.f32.mxu0 0.0
  %245 = vmatmul.mubr.f32.gmra.mrb[0].mxu0 %v94
  %v246 = vpop.f32.mrb[0].mxu0
  %v247 = vadd.f32 %v41, %v246
  %v248 = vpop.f32.mrb[0].mxu0
  %v249 = vadd.f32 %v45, %v248
  %250 = vmatprep.mubr.f32.mxu0 0.0
  %251 = vmatmul.mubr.f32.gmra.mrb[0].mxu0 %v97
  %v252 = vpop.f32.mrb[0].mxu0
  %v253 = vadd.f32 %v41, %v252
  %v254 = vpop.f32.mrb[0].mxu0
  %v255 = vadd.f32 %v45, %v254
  %256 = vmatprep.mubr.f32.mxu0 0.0
  %257 = vmatmul.mubr.f32.gmra.mrb[0].mxu0 %v100
  %v258 = vpop.f32.mrb[0].mxu0
  %v259 = vadd.f32 %v41, %v258
  %v260 = vpop.f32.mrb[0].mxu0
  %v261 = vadd.f32 %v45, %v260
  %262 = vdwg.mxu0
  %263 = vmatprep.subr.mxu0 0.0
  %264 = vmatpush1.msra.mxu0 %v32
  %265 = vmatprep.subr.mxu0 0.0
  %266 = vmatpush1.msra.mxu0 %v35
  %267 = vmatprep.subr.mxu0 0.0
  %268 = vmatpush1.msra.mxu0 0.0
  %269 = vmatprep.subr.mxu0 0.0
  %270 = vmatpush1.msra.mxu0 0.0
  %271 = vmatprep.subr.mxu0 0.0
  %272 = vmatpush1.msra.mxu0 0.0
  %273 = vmatprep.subr.mxu0 0.0
  %274 = vmatpush1.msra.mxu0 0.0
  %275 = vmatprep.subr.mxu0 0.0
  %276 = vmatpush1.msra.mxu0 0.0
  %277 = vmatprep.subr.mxu0 0.0
  %278 = vmatpush1.msra.mxu0 0.0
  %279 = vmatprep.subr.mxu0 0.0
  %280 = vmatpush1.msra.mxu0 0.0
  %281 = vmatprep.subr.mxu0 0.0
  %282 = vmatpush1.msra.mxu0 0.0
  %283 = vmatprep.subr.mxu0 0.0
  %284 = vmatpush1.msra.mxu0 0.0
  %285 = vmatprep.subr.mxu0 0.0
  %286 = vmatpush1.msra.mxu0 0.0
  %287 = vmatprep.subr.mxu0 0.0
  %288 = vmatpush1.msra.mxu0 0.0
  %289 = vmatprep.subr.mxu0 0.0
  %290 = vmatpush1.msra.mxu0 0.0
  %291 = vmatprep.subr.mxu0 0.0
  %292 = vmatpush1.msra.mxu0 0.0
  %293 = vmatprep.subr.mxu0 0.0
  %294 = vmatpush1.msra.mxu0 0.0
  %295 = vmatprep.subr.mxu0 0.0
  %296 = vmatpush1.msra.mxu0 0.0
  %297 = vmatprep.subr.mxu0 0.0
  %298 = vmatpush1.msra.mxu0 0.0
  %299 = vmatprep.subr.mxu0 0.0
  %300 = vmatpush1.msra.mxu0 0.0
  %301 = vmatprep.subr.mxu0 0.0
  %302 = vmatpush1.msra.mxu0 0.0
  %303 = vmatprep.subr.mxu0 0.0
  %304 = vmatpush1.msra.mxu0 0.0
  %305 = vmatprep.subr.mxu0 0.0
  %306 = vmatpush1.msra.mxu0 0.0
  %307 = vmatprep.subr.mxu0 0.0
  %308 = vmatpush1.msra.mxu0 0.0
  %309 = vmatprep.subr.mxu0 0.0
  %310 = vmatpush1.msra.mxu0 0.0
  %311 = vmatprep.subr.mxu0 0.0
  %312 = vmatpush1.msra.mxu0 0.0
  %313 = vmatprep.subr.mxu0 0.0
  %314 = vmatpush1.msra.mxu0 0.0
  %315 = vmatprep.subr.mxu0 0.0
  %316 = vmatpush1.msra.mxu0 0.0
  %317 = vmatprep.subr.mxu0 0.0
  %318 = vmatpush1.msra.mxu0 0.0
  %319 = vmatprep.subr.mxu0 0.0
  %320 = vmatpush1.msra.mxu0 0.0
  %321 = vmatprep.subr.mxu0 0.0
  %322 = vmatpush1.msra.mxu0 0.0
  %323 = vmatprep.subr.mxu0 0.0
  %324 = vmatpush1.msra.mxu0 0.0
  %325 = vmatprep.subr.mxu0 0.0
  %326 = vmatpush1.msra.mxu0 0.0
  %327 = vmatprep.mubr.f32.mxu0 0.0
  %328 = vmatmul.mubr.f32.gmra.mrb[0].mxu0 %v55
  %v329 = vpop.f32.mrb[0].mxu0
  %v330 = vadd.f32 %v49, %v329
  %v331 = vpop.f32.mrb[0].mxu0
  %332 = vmatprep.mubr.f32.mxu0 0.0
  %333 = vmatmul.mubr.f32.gmra.mrb[0].mxu0 %v58
  %v334 = vpop.f32.mrb[0].mxu0
  %v335 = vadd.f32 %v49, %v334
  %v336 = vpop.f32.mrb[0].mxu0
  %337 = vmatprep.mubr.f32.mxu0 0.0
  %338 = vmatmul.mubr.f32.gmra.mrb[0].mxu0 %v61
  %v339 = vpop.f32.mrb[0].mxu0
  %v340 = vadd.f32 %v49, %v339
  %v341 = vpop.f32.mrb[0].mxu0
  %342 = vmatprep.mubr.f32.mxu0 0.0
  %343 = vmatmul.mubr.f32.gmra.mrb[0].mxu0 %v64
  %v344 = vpop.f32.mrb[0].mxu0
  %v345 = vadd.f32 %v49, %v344
  %v346 = vpop.f32.mrb[0].mxu0
  %347 = vmatprep.mubr.f32.mxu0 0.0
  %348 = vmatmul.mubr.f32.gmra.mrb[0].mxu0 %v67
  %v349 = vpop.f32.mrb[0].mxu0
  %v350 = vadd.f32 %v49, %v349
  %v351 = vpop.f32.mrb[0].mxu0
  %352 = vmatprep.mubr.f32.mxu0 0.0
  %353 = vmatmul.mubr.f32.gmra.mrb[0].mxu0 %v70
  %v354 = vpop.f32.mrb[0].mxu0
  %v355 = vadd.f32 %v49, %v354
  %v356 = vpop.f32.mrb[0].mxu0
  %357 = vmatprep.mubr.f32.mxu0 0.0
  %358 = vmatmul.mubr.f32.gmra.mrb[0].mxu0 %v73
  %v359 = vpop.f32.mrb[0].mxu0
  %v360 = vadd.f32 %v49, %v359
  %v361 = vpop.f32.mrb[0].mxu0
  %362 = vmatprep.mubr.f32.mxu0 0.0
  %363 = vmatmul.mubr.f32.gmra.mrb[0].mxu0 %v76
  %v364 = vpop.f32.mrb[0].mxu0
  %v365 = vadd.f32 %v49, %v364
  %v366 = vpop.f32.mrb[0].mxu0
  %367 = vmatprep.mubr.f32.mxu0 0.0
  %368 = vmatmul.mubr.f32.gmra.mrb[0].mxu0 %v79
  %v369 = vpop.f32.mrb[0].mxu0
  %v370 = vadd.f32 %v49, %v369
  %v371 = vpop.f32.mrb[0].mxu0
  %372 = vmatprep.mubr.f32.mxu0 0.0
  %373 = vmatmul.mubr.f32.gmra.mrb[0].mxu0 %v82
  %v374 = vpop.f32.mrb[0].mxu0
  %v375 = vadd.f32 %v49, %v374
  %v376 = vpop.f32.mrb[0].mxu0
  %377 = vmatprep.mubr.f32.mxu0 0.0
  %378 = vmatmul.mubr.f32.gmra.mrb[0].mxu0 %v85
  %v379 = vpop.f32.mrb[0].mxu0
  %v380 = vadd.f32 %v49, %v379
  %v381 = vpop.f32.mrb[0].mxu0
  %382 = vmatprep.mubr.f32.mxu0 0.0
  %383 = vmatmul.mubr.f32.gmra.mrb[0].mxu0 %v88
  %v384 = vpop.f32.mrb[0].mxu0
  %v385 = vadd.f32 %v49, %v384
  %v386 = vpop.f32.mrb[0].mxu0
  %387 = vmatprep.mubr.f32.mxu0 0.0
  %388 = vmatmul.mubr.f32.gmra.mrb[0].mxu0 %v91
  %v389 = vpop.f32.mrb[0].mxu0
  %v390 = vadd.f32 %v49, %v389
  %v391 = vpop.f32.mrb[0].mxu0
  %392 = vmatprep.mubr.f32.mxu0 0.0
  %393 = vmatmul.mubr.f32.gmra.mrb[0].mxu0 %v94
  %v394 = vpop.f32.mrb[0].mxu0
  %v395 = vadd.f32 %v49, %v394
  %v396 = vpop.f32.mrb[0].mxu0
  %397 = vmatprep.mubr.f32.mxu0 0.0
  %398 = vmatmul.mubr.f32.gmra.mrb[0].mxu0 %v97
  %v399 = vpop.f32.mrb[0].mxu0
  %v400 = vadd.f32 %v49, %v399
  %v401 = vpop.f32.mrb[0].mxu0
  %402 = vmatprep.mubr.f32.mxu0 0.0
  %403 = vmatmul.mubr.f32.gmra.mrb[0].mxu0 %v100
  %v404 = vpop.f32.mrb[0].mxu0
  %v405 = vadd.f32 %v49, %v404
  %v406 = vpop.f32.mrb[0].mxu0
  %407 = vdwg.mxu0
  %408 = vst [vmem:[%s3] sm:$0xff] %v169
  %409 = vst [vmem:[%s3 + $0x8] sm:$0xff] %v171
  %410 = vst [vmem:[%s3 + $0x10] sm:$0xff] %v330
  %411 = vst [vmem:[%s3 + $0x18] sm:$0xff] %v175
  %412 = vst [vmem:[%s3 + $0x20] sm:$0xff] %v177
  %413 = vst [vmem:[%s3 + $0x28] sm:$0xff] %v335
  %414 = vst [vmem:[%s3 + $0x30] sm:$0xff] %v181
  %415 = vst [vmem:[%s3 + $0x38] sm:$0xff] %v183
  %416 = vst [vmem:[%s3 + $0x40] sm:$0xff] %v340
  %417 = vst [vmem:[%s3 + $0x48] sm:$0xff] %v187
  %418 = vst [vmem:[%s3 + $0x50] sm:$0xff] %v189
  %419 = vst [vmem:[%s3 + $0x58] sm:$0xff] %v345
  %420 = vst [vmem:[%s3 + $0x60] sm:$0xff] %v193
  %421 = vst [vmem:[%s3 + $0x68] sm:$0xff] %v195
  %422 = vst [vmem:[%s3 + $0x70] sm:$0xff] %v350
  %423 = vst [vmem:[%s3 + $0x78] sm:$0xff] %v199
  %424 = vst [vmem:[%s3 + $0x80] sm:$0xff] %v201
  %425 = vst [vmem:[%s3 + $0x88] sm:$0xff] %v355
  %426 = vst [vmem:[%s3 + $0x90] sm:$0xff] %v205
  %427 = vst [vmem:[%s3 + $0x98] sm:$0xff] %v207
  %428 = vst [vmem:[%s3 + $0xa0] sm:$0xff] %v360
  %429 = vst [vmem:[%s3 + $0xa8] sm:$0xff] %v211
  %430 = vst [vmem:[%s3 + $0xb0] sm:$0xff] %v213
  %431 = vst [vmem:[%s3 + $0xb8] sm:$0xff] %v365
  %432 = vst [vmem:[%s3 + $0xc0] sm:$0xff] %v217
  %433 = vst [vmem:[%s3 + $0xc8] sm:$0xff] %v219
  %434 = vst [vmem:[%s3 + $0xd0] sm:$0xff] %v370
  %435 = vst [vmem:[%s3 + $0xd8] sm:$0xff] %v223
  %436 = vst [vmem:[%s3 + $0xe0] sm:$0xff] %v225
  %437 = vst [vmem:[%s3 + $0xe8] sm:$0xff] %v375
  %438 = vst [vmem:[%s3 + $0xf0] sm:$0xff] %v229
  %439 = vst [vmem:[%s3 + $0xf8] sm:$0xff] %v231
  %440 = vst [vmem:[%s3 + $0x100] sm:$0xff] %v380
  %441 = vst [vmem:[%s3 + $0x108] sm:$0xff] %v235
  %442 = vst [vmem:[%s3 + $0x110] sm:$0xff] %v237
  %443 = vst [vmem:[%s3 + $0x118] sm:$0xff] %v385
  %444 = vst [vmem:[%s3 + $0x120] sm:$0xff] %v241
  %445 = vst [vmem:[%s3 + $0x128] sm:$0xff] %v243
  %446 = vst [vmem:[%s3 + $0x130] sm:$0xff] %v390
  %447 = vst [vmem:[%s3 + $0x138] sm:$0xff] %v247
  %448 = vst [vmem:[%s3 + $0x140] sm:$0xff] %v249
  %449 = vst [vmem:[%s3 + $0x148] sm:$0xff] %v395
  %450 = vst [vmem:[%s3 + $0x150] sm:$0xff] %v253
  %451 = vst [vmem:[%s3 + $0x158] sm:$0xff] %v255
  %452 = vst [vmem:[%s3 + $0x160] sm:$0xff] %v400
  %453 = vst [vmem:[%s3 + $0x168] sm:$0xff] %v259
  %454 = vst [vmem:[%s3 + $0x170] sm:$0xff] %v261
  %455 = vst [vmem:[%s3 + $0x178] sm:$0xff] %v405
  // Predicated region
  $region14: #{my_gru_forward.2} parent=0 // pred_check
    _
  $region15: #{my_gru_forward.2} parent=0 // pred_check_branch
    %457 = sbr.rel (0) target = $region17
  $region16: #{my_gru_forward.2} parent=0 // pred_region
    _
  $region17: #{my_gru_forward.2} parent=0 // pred_fallthru
    _
  // Predicated region
  $region18: #{my_gru_forward.2} parent=0 // pred_check
    _
  $region19: #{my_gru_forward.2} parent=0 // pred_check_branch
    %459 = sbr.rel (0) target = $region21
  $region20: #{my_gru_forward.2} parent=0 // pred_region
    _
  $region21: #{my_gru_forward.2} parent=0 // pred_fallthru
    _

// kernel: my_gru_forward.3
$region0: #{my_gru_forward.3}
  #allocation0 [shape = 'u32[]', space=smem, size = 0x4, offset = 0x4, fixed_abs, tag = 'smem constant byte address 0x4 - core index']
  #allocation1 [shape = 'u32[144,128]{1,0:T(1,128)}', space=vmem, size = 0x12000, scoped, tag = 'internal scratch']
  #allocation2 [shape = 'f32[8,128]{1,0:T(8,128)}', space=vmem, size = 0x1000, scoped, tag = 'scratch operand']
  %s0 = inlined_call_operand.vmem [shape: f32[16,8,384], index: 0, kind: input, shape index: {}]
  %s1 = inlined_call_operand.vmem [shape: f32[8,128], index: 1, kind: input, shape index: {}]
  %s2 = inlined_call_operand.vmem [shape: f32[128,384], index: 2, kind: input, shape index: {}]
  %s3 = inlined_call_operand.vmem [shape: f32[1,128], index: 3, kind: input, shape index: {}]
  %s4 = inlined_call_operand.vmem [shape: f32[16,8,128], index: 4, kind: output, shape index: {}]
  %s5 = sld [smem:[#allocation0]]
  $region53: #{my_gru_forward.3} parent=0
    _
  %s7 = ssub.s32 1, %s5
  %s8 = scalar_select 0, %s7, %s5
  loop: start=0, step=1, limit=4
  $region2: #{my_gru_forward.3} parent=0 // loop_pre_header
    _
  $region3: #{my_gru_forward.3} parent=0 // loop_header
    %s10 = sphi 0, %s14
    %p11 = scmp.ge.s32.totalorder %s10, 4
    %s20 = sphi 0, %s22
    %s23 = sphi 0, %s20
    %s24 = sphi 0, %s23
    %s40 = sphi 0, %s24
    %s44 = sphi 0, %s44
    %s46 = sphi 0, %s44
    %s47 = sphi 0, %s46
    %s61 = sphi 0, %s47
    %s65 = sphi 0, %s65
    %s67 = sphi 0, %s65
    %s68 = sphi 0, %s67
    %s82 = sphi 0, %s68
    %s86 = sphi 0, %s86
    %s88 = sphi 0, %s86
    %s89 = sphi 0, %s88
    %s103 = sphi 0, %s89
    %s109 = sphi 0, %s111
    %s112 = sphi 0, %s109
    %s113 = sphi 0, %s112
    %s129 = sphi 0, %s113
  $region4: #{my_gru_forward.3} parent=0 // loop_header_branch
    %13 = sbr.rel (%p11) target = $region8
  $region5: #{my_gru_forward.3} parent=0 // loop_body
    %s15 = ssub.s32 %s10, 1
    %s16 = ssub.s32 %s10, 2
    %s17 = sadd.s32 %s10, 1
    %s18 = ssub.s32 %s10, %s17
    %p19 = scmp.eq.s32.totalorder %s18, 0
    %s21 = sadd.s32 %s20, 1
    %s22 = scalar_select %p19, %s20, %s21
    %p25 = pneg %p19
    %p26 = scmp.eq.s32.totalorder %s10, 1
    %p27 = por %p25, %p26
    %p28 = scmp.ne.s32.totalorder %s20, %s23
    %p29 = scmp.eq.s32.totalorder %s10, 0
    %p30 = por %p28, %p29
    %p31 = scmp.ne.s32.totalorder %s20, %s23
    %p32 = scmp.eq.s32.totalorder %s15, 1
    %p33 = por %p31, %p32
    %p34 = scmp.ne.s32.totalorder %s23, %s24
    %p35 = scmp.eq.s32.totalorder %s15, 0
    %p36 = por %p34, %p35
    %p37 = scmp.ne.s32.totalorder %s23, %s24
    %p38 = scmp.eq.s32.totalorder %s16, 1
    %p39 = por %p37, %p38
    %p41 = scmp.ne.s32.totalorder %s24, %s40
    %p42 = scmp.eq.s32.totalorder %s16, 0
    %p43 = por %p41, %p42
    %s45 = sadd.s32 %s44, 1
    %p48 = scmp.eq.s32.totalorder %s10, 1
    %p49 = scmp.ne.s32.totalorder %s44, %s46
    %p50 = scmp.eq.s32.totalorder %s10, 0
    %p51 = por %p49, %p50
    %p52 = scmp.ne.s32.totalorder %s44, %s46
    %p53 = scmp.eq.s32.totalorder %s15, 1
    %p54 = por %p52, %p53
    %p55 = scmp.ne.s32.totalorder %s46, %s47
    %p56 = scmp.eq.s32.totalorder %s15, 0
    %p57 = por %p55, %p56
    %p58 = scmp.ne.s32.totalorder %s46, %s47
    %p59 = scmp.eq.s32.totalorder %s16, 1
    %p60 = por %p58, %p59
    %p62 = scmp.ne.s32.totalorder %s47, %s61
    %p63 = scmp.eq.s32.totalorder %s16, 0
    %p64 = por %p62, %p63
    %s66 = sadd.s32 %s65, 1
    %p69 = scmp.eq.s32.totalorder %s10, 1
    %p70 = scmp.ne.s32.totalorder %s65, %s67
    %p71 = scmp.eq.s32.totalorder %s10, 0
    %p72 = por %p70, %p71
    %p73 = scmp.ne.s32.totalorder %s65, %s67
    %p74 = scmp.eq.s32.totalorder %s15, 1
    %p75 = por %p73, %p74
    %p76 = scmp.ne.s32.totalorder %s67, %s68
    %p77 = scmp.eq.s32.totalorder %s15, 0
    %p78 = por %p76, %p77
    %p79 = scmp.ne.s32.totalorder %s67, %s68
    %p80 = scmp.eq.s32.totalorder %s16, 1
    %p81 = por %p79, %p80
    %p83 = scmp.ne.s32.totalorder %s68, %s82
    %p84 = scmp.eq.s32.totalorder %s16, 0
    %p85 = por %p83, %p84
    %s87 = sadd.s32 %s86, 1
    %p90 = scmp.eq.s32.totalorder %s10, 1
    %p91 = scmp.ne.s32.totalorder %s86, %s88
    %p92 = scmp.eq.s32.totalorder %s10, 0
    %p93 = por %p91, %p92
    %p94 = scmp.ne.s32.totalorder %s86, %s88
    %p95 = scmp.eq.s32.totalorder %s15, 1
    %p96 = por %p94, %p95
    %p97 = scmp.ne.s32.totalorder %s88, %s89
    %p98 = scmp.eq.s32.totalorder %s15, 0
    %p99 = por %p97, %p98
    %p100 = scmp.ne.s32.totalorder %s88, %s89
    %p101 = scmp.eq.s32.totalorder %s16, 1
    %p102 = por %p100, %p101
    %p104 = scmp.ne.s32.totalorder %s89, %s103
    %p105 = scmp.eq.s32.totalorder %s16, 0
    %p106 = por %p104, %p105
    %s107 = ssub.s32 %s10, %s17
    %p108 = scmp.eq.s32.totalorder %s107, 0
    %s110 = sadd.s32 %s109, 1
    %s111 = scalar_select %p108, %s109, %s110
    %p114 = pneg %p108
    %p115 = scmp.eq.s32.totalorder %s10, 1
    %p116 = por %p114, %p115
    %p117 = scmp.ne.s32.totalorder %s109, %s112
    %p118 = scmp.eq.s32.totalorder %s10, 0
    %p119 = por %p117, %p118
    %p120 = scmp.ne.s32.totalorder %s109, %s112
    %p121 = scmp.eq.s32.totalorder %s15, 1
    %p122 = por %p120, %p121
    %p123 = scmp.ne.s32.totalorder %s112, %s113
    %p124 = scmp.eq.s32.totalorder %s15, 0
    %p125 = por %p123, %p124
    %p126 = scmp.ne.s32.totalorder %s112, %s113
    %p127 = scmp.eq.s32.totalorder %s16, 1
    %p128 = por %p126, %p127
    %p130 = scmp.ne.s32.totalorder %s113, %s129
    %p131 = scmp.eq.s32.totalorder %s16, 0
    %p132 = por %p130, %p131
    %p133 = scmp.le.s32.totalorder 1, %s10
    %p134 = scmp.lt.s32.totalorder %s10, 3
    %p135 = pnand %p133, %p134
    %p136 = pneg %p135
    // Predicated region
    $region9: #{my_gru_forward.3} parent=5 // pred_check
      _
    $region10: #{my_gru_forward.3} parent=5 // pred_check_branch
      %138 = sbr.rel (%p135) target = $region12
    $region11: #{my_gru_forward.3} parent=5 // pred_region
      %s139 = ssub.s32 %s10, 1
      // Predicated region
      $region13: #{my_gru_forward.3} parent=11 // pred_check
        %p140 = pneg %p57
      $region14: #{my_gru_forward.3} parent=11 // pred_check_branch
        %142 = sbr.rel (%p140) target = $region16
      $region15: #{my_gru_forward.3} parent=11 // pred_region
        _
      $region16: #{my_gru_forward.3} parent=11 // pred_fallthru
        _
      // Predicated region
      $region17: #{my_gru_forward.3} parent=11 // pred_check
        %p143 = pneg %p78
      $region18: #{my_gru_forward.3} parent=11 // pred_check_branch
        %145 = sbr.rel (%p143) target = $region20
      $region19: #{my_gru_forward.3} parent=11 // pred_region
        _
      $region20: #{my_gru_forward.3} parent=11 // pred_fallthru
        _
      // Predicated region
      $region21: #{my_gru_forward.3} parent=11 // pred_check
        %p146 = pneg %p99
      $region22: #{my_gru_forward.3} parent=11 // pred_check_branch
        %148 = sbr.rel (%p146) target = $region24
      $region23: #{my_gru_forward.3} parent=11 // pred_region
        _
      $region24: #{my_gru_forward.3} parent=11 // pred_fallthru
        _
    $region12: #{my_gru_forward.3} parent=5 // pred_fallthru
      _
    %p149 = scmp.lt.s32.totalorder %s10, 2
    // Predicated region
    $region25: #{my_gru_forward.3} parent=5 // pred_check
      %p150 = pneg %p149
    $region26: #{my_gru_forward.3} parent=5 // pred_check_branch
      %152 = sbr.rel (%p150) target = $region28
    $region27: #{my_gru_forward.3} parent=5 // pred_region
      // Predicated region
      $region29: #{my_gru_forward.3} parent=27 // pred_check
        %p153 = pneg %p30
      $region30: #{my_gru_forward.3} parent=27 // pred_check_branch
        %155 = sbr.rel (%p153) target = $region32
      $region31: #{my_gru_forward.3} parent=27 // pred_region
        %s156 = smul.u32 8, %s10
        %p157 = scmp.lt.s32.totalorder %s156, 15
        %s158 = scalar_select %p157, %s156, 15
        %s159 = smul.addr %s158, 3
        %s160 = smul.addr %s159, 8
        %s161 = scalar_lea.vmem %s0, %s160
        %s162 = smul.u32 8, %s10
      $region32: #{my_gru_forward.3} parent=27 // pred_fallthru
        _
    $region28: #{my_gru_forward.3} parent=5 // pred_fallthru
      _
    %p163 = scmp.le.s32.totalorder 1, %s10
    %p164 = scmp.lt.s32.totalorder %s10, 3
    %p165 = pnand %p163, %p164
    %p166 = pneg %p165
    // Predicated region
    $region33: #{my_gru_forward.3} parent=5 // pred_check
      _
    $region34: #{my_gru_forward.3} parent=5 // pred_check_branch
      %168 = sbr.rel (%p165) target = $region36
    $region35: #{my_gru_forward.3} parent=5 // pred_region
      %s169 = ssub.s32 %s10, 1
      %s170 = smul.u32 8, %s15
      %p171 = scmp.lt.s32.totalorder %s170, 15
      %s172 = scalar_select %p171, %s170, 15
      %s173 = smul.addr %s172, 3
      %s174 = smul.addr %s173, 8
      %s175 = scalar_lea.vmem %s0, %s174
      %p176 = pneg %p36
      %p177 = pneg %p33
      %p178 = pneg %p57
      %p179 = pneg %p54
      %p180 = pneg %p78
      %p181 = pneg %p75
      %p182 = pneg %p99
      %p183 = pneg %p96
      %p184 = pneg %p125
      %p185 = pneg %p122
      %s186 = smul.u32 8, %s15
      %p187 = scmp.lt.s32.totalorder %s186, 15
      %s188 = scalar_select %p187, %s186, 15
      %s189 = smul.addr %s188, 8
      %s190 = scalar_lea.vmem %s4, %s189
      %s191 = smul.u32 8, %s15
      %p192 = scmp.lt.s32.totalorder %s191, 15
      %s193 = scalar_select %p192, %s191, 15
      %s194 = smul.addr %s193, 3
      %s195 = smul.addr %s194, 8
      %s196 = scalar_lea.vmem %s0, %s195
      %s197 = smul.u32 8, %s15
      %s198 = smul.u32 8, %s15
      %p199 = scmp.lt.s32.totalorder %s198, 15
      %s200 = scalar_select %p199, %s198, 15
      %s201 = smul.addr %s200, 8
      %s202 = scalar_lea.vmem %s4, %s201
      %s203 = smul.u32 8, %s15
      %p204 = scmp.eq.s32.totalorder %s15, 0
      // Predicated region
      $region37: #{my_gru_forward.3} parent=35 // pred_check
        %p205 = pneg %p204
      $region38: #{my_gru_forward.3} parent=35 // pred_check_branch
        %207 = sbr.rel (%p205) target = $region40
      $region39: #{my_gru_forward.3} parent=35 // pred_region
        %v208 = vld [vmem:[%s1] sm:$0xff]
        %209 = vst [vmem:[#allocation2] sm:$0xff] %v208
      $region40: #{my_gru_forward.3} parent=35 // pred_fallthru
        _
      %v210 = vld [vmem:[%s2] sm:$0xff]
      %v211 = vld [vmem:[%s2 + $0x8] sm:$0xff]
      %v212 = vld [vmem:[%s2 + $0x10] sm:$0xff]
      %v213 = vld [vmem:[%s2 + $0x18] sm:$0xff]
      %v214 = vld [vmem:[%s2 + $0x20] sm:$0xff]
      %v215 = vld [vmem:[%s2 + $0x28] sm:$0xff]
      %v216 = vld [vmem:[%s2 + $0x30] sm:$0xff]
      %v217 = vld [vmem:[%s2 + $0x38] sm:$0xff]
      %v218 = vld [vmem:[%s2 + $0x40] sm:$0xff]
      %v219 = vld [vmem:[%s2 + $0x48] sm:$0xff]
      %v220 = vld [vmem:[%s2 + $0x50] sm:$0xff]
      %v221 = vld [vmem:[%s2 + $0x58] sm:$0xff]
      %v222 = vld [vmem:[%s2 + $0x60] sm:$0xff]
      %v223 = vld [vmem:[%s2 + $0x68] sm:$0xff]
      %v224 = vld [vmem:[%s2 + $0x70] sm:$0xff]
      %v225 = vld [vmem:[%s2 + $0x78] sm:$0xff]
      %v226 = vld [vmem:[%s2 + $0x80] sm:$0xff]
      %v227 = vld [vmem:[%s2 + $0x88] sm:$0xff]
      %v228 = vld [vmem:[%s2 + $0x90] sm:$0xff]
      %v229 = vld [vmem:[%s2 + $0x98] sm:$0xff]
      %v230 = vld [vmem:[%s2 + $0xa0] sm:$0xff]
      %v231 = vld [vmem:[%s2 + $0xa8] sm:$0xff]
      %v232 = vld [vmem:[%s2 + $0xb0] sm:$0xff]
      %v233 = vld [vmem:[%s2 + $0xb8] sm:$0xff]
      %v234 = vld [vmem:[%s2 + $0xc0] sm:$0xff]
      %v235 = vld [vmem:[%s2 + $0xc8] sm:$0xff]
      %v236 = vld [vmem:[%s2 + $0xd0] sm:$0xff]
      %v237 = vld [vmem:[%s2 + $0xd8] sm:$0xff]
      %v238 = vld [vmem:[%s2 + $0xe0] sm:$0xff]
      %v239 = vld [vmem:[%s2 + $0xe8] sm:$0xff]
      %v240 = vld [vmem:[%s2 + $0xf0] sm:$0xff]
      %v241 = vld [vmem:[%s2 + $0xf8] sm:$0xff]
      %v242 = vld [vmem:[%s2 + $0x100] sm:$0xff]
      %v243 = vld [vmem:[%s2 + $0x108] sm:$0xff]
      %v244 = vld [vmem:[%s2 + $0x110] sm:$0xff]
      %v245 = vld [vmem:[%s2 + $0x118] sm:$0xff]
      %v246 = vld [vmem:[%s2 + $0x120] sm:$0xff]
      %v247 = vld [vmem:[%s2 + $0x128] sm:$0xff]
      %v248 = vld [vmem:[%s2 + $0x130] sm:$0xff]
      %v249 = vld [vmem:[%s2 + $0x138] sm:$0xff]
      %v250 = vld [vmem:[%s2 + $0x140] sm:$0xff]
      %v251 = vld [vmem:[%s2 + $0x148] sm:$0xff]
      %v252 = vld [vmem:[%s2 + $0x150] sm:$0xff]
      %v253 = vld [vmem:[%s2 + $0x158] sm:$0xff]
      %v254 = vld [vmem:[%s2 + $0x160] sm:$0xff]
      %v255 = vld [vmem:[%s2 + $0x168] sm:$0xff]
      %v256 = vld [vmem:[%s2 + $0x170] sm:$0xff]
      %v257 = vld [vmem:[%s2 + $0x178] sm:$0xff]
      %v258 = vld [vmem:[%s3] sm:$0x1]
      %v259 = vld [vmem:[#allocation2] sm:$0xff]
      %260 = vmatprep.subr.mxu0 %v211
      %261 = vmatpush1.msra.mxu0 %v210
      %262 = vmatprep.subr.mxu0 %v214
      %263 = vmatpush1.msra.mxu0 %v213
      %264 = vmatprep.subr.mxu0 %v217
      %265 = vmatpush1.msra.mxu0 %v216
      %266 = vmatprep.subr.mxu0 %v220
      %267 = vmatpush1.msra.mxu0 %v219
      %268 = vmatprep.subr.mxu0 %v223
      %269 = vmatpush1.msra.mxu0 %v222
      %270 = vmatprep.subr.mxu0 %v226
      %271 = vmatpush1.msra.mxu0 %v225
      %272 = vmatprep.subr.mxu0 %v229
      %273 = vmatpush1.msra.mxu0 %v228
      %274 = vmatprep.subr.mxu0 %v232
      %275 = vmatpush1.msra.mxu0 %v231
      %276 = vmatprep.subr.mxu0 %v235
      %277 = vmatpush1.msra.mxu0 %v234
      %278 = vmatprep.subr.mxu0 %v238
      %279 = vmatpush1.msra.mxu0 %v237
      %280 = vmatprep.subr.mxu0 %v241
      %281 = vmatpush1.msra.mxu0 %v240
      %282 = vmatprep.subr.mxu0 %v244
      %283 = vmatpush1.msra.mxu0 %v243
      %284 = vmatprep.subr.mxu0 %v247
      %285 = vmatpush1.msra.mxu0 %v246
      %286 = vmatprep.subr.mxu0 %v250
      %287 = vmatpush1.msra.mxu0 %v249
      %288 = vmatprep.subr.mxu0 %v253
      %289 = vmatpush1.msra.mxu0 %v252
      %290 = vmatprep.subr.mxu0 %v256
      %291 = vmatpush1.msra.mxu0 %v255
      %292 = vmatprep.subr.mxu0 0.0
      %293 = vmatpush1.msra.mxu0 0.0
      %294 = vmatprep.subr.mxu0 0.0
      %295 = vmatpush1.msra.mxu0 0.0
      %296 = vmatprep.subr.mxu0 0.0
      %297 = vmatpush1.msra.mxu0 0.0
      %298 = vmatprep.subr.mxu0 0.0
      %299 = vmatpush1.msra.mxu0 0.0
      %300 = vmatprep.subr.mxu0 0.0
      %301 = vmatpush1.msra.mxu0 0.0
      %302 = vmatprep.subr.mxu0 0.0
      %303 = vmatpush1.msra.mxu0 0.0
      %304 = vmatprep.subr.mxu0 0.0
      %305 = vmatpush1.msra.mxu0 0.0
      %306 = vmatprep.subr.mxu0 0.0
      %307 = vmatpush1.msra.mxu0 0.0
      %308 = vmatprep.subr.mxu0 0.0
      %309 = vmatpush1.msra.mxu0 0.0
      %310 = vmatprep.subr.mxu0 0.0
      %311 = vmatpush1.msra.mxu0 0.0
      %312 = vmatprep.subr.mxu0 0.0
      %313 = vmatpush1.msra.mxu0 0.0
      %314 = vmatprep.subr.mxu0 0.0
      %315 = vmatpush1.msra.mxu0 0.0
      %316 = vmatprep.subr.mxu0 0.0
      %317 = vmatpush1.msra.mxu0 0.0
      %318 = vmatprep.subr.mxu0 0.0
      %319 = vmatpush1.msra.mxu0 0.0
      %320 = vmatprep.subr.mxu0 0.0
      %321 = vmatpush1.msra.mxu0 0.0
      %322 = vmatprep.subr.mxu0 0.0
      %323 = vmatpush1.msra.mxu0 0.0
      %324 = vmatprep.mubr.f32.mxu0 0.0
      %325 = vmatmul.mubr.f32.gmra.mrb[0].mxu0 %v259
      %v326 = vpop.f32.mrb[0].mxu0
      %v327 = vadd.f32 0.0, %v326
      %v328 = vpop.f32.mrb[0].mxu0
      %v329 = vadd.f32 0.0, %v328
      %330 = vdwg.mxu0
      %331 = vmatprep.subr.mxu0 0.0
      %332 = vmatpush1.msra.mxu0 %v212
      %333 = vmatprep.subr.mxu0 0.0
      %334 = vmatpush1.msra.mxu0 %v215
      %335 = vmatprep.subr.mxu0 0.0
      %336 = vmatpush1.msra.mxu0 %v218
      %337 = vmatprep.subr.mxu0 0.0
      %338 = vmatpush1.msra.mxu0 %v221
      %339 = vmatprep.subr.mxu0 0.0
      %340 = vmatpush1.msra.mxu0 %v224
      %341 = vmatprep.subr.mxu0 0.0
      %342 = vmatpush1.msra.mxu0 %v227
      %343 = vmatprep.subr.mxu0 0.0
      %344 = vmatpush1.msra.mxu0 %v230
      %345 = vmatprep.subr.mxu0 0.0
      %346 = vmatpush1.msra.mxu0 %v233
      %347 = vmatprep.subr.mxu0 0.0
      %348 = vmatpush1.msra.mxu0 %v236
      %349 = vmatprep.subr.mxu0 0.0
      %350 = vmatpush1.msra.mxu0 %v239
      %351 = vmatprep.subr.mxu0 0.0
      %352 = vmatpush1.msra.mxu0 %v242
      %353 = vmatprep.subr.mxu0 0.0
      %354 = vmatpush1.msra.mxu0 %v245
      %355 = vmatprep.subr.mxu0 0.0
      %356 = vmatpush1.msra.mxu0 %v248
      %357 = vmatprep.subr.mxu0 0.0
      %358 = vmatpush1.msra.mxu0 %v251
      %359 = vmatprep.subr.mxu0 0.0
      %360 = vmatpush1.msra.mxu0 %v254
      %361 = vmatprep.subr.mxu0 0.0
      %362 = vmatpush1.msra.mxu0 %v257
      %363 = vmatprep.subr.mxu0 0.0
      %364 = vmatpush1.msra.mxu0 0.0
      %365 = vmatprep.subr.mxu0 0.0
      %366 = vmatpush1.msra.mxu0 0.0
      %367 = vmatprep.subr.mxu0 0.0
      %368 = vmatpush1.msra.mxu0 0.0
      %369 = vmatprep.subr.mxu0 0.0
      %370 = vmatpush1.msra.mxu0 0.0
      %371 = vmatprep.subr.mxu0 0.0
      %372 = vmatpush1.msra.mxu0 0.0
      %373 = vmatprep.subr.mxu0 0.0
      %374 = vmatpush1.msra.mxu0 0.0
      %375 = vmatprep.subr.mxu0 0.0
      %376 = vmatpush1.msra.mxu0 0.0
      %377 = vmatprep.subr.mxu0 0.0
      %378 = vmatpush1.msra.mxu0 0.0
      %379 = vmatprep.subr.mxu0 0.0
      %380 = vmatpush1.msra.mxu0 0.0
      %381 = vmatprep.subr.mxu0 0.0
      %382 = vmatpush1.msra.mxu0 0.0
      %383 = vmatprep.subr.mxu0 0.0
      %384 = vmatpush1.msra.mxu0 0.0
      %385 = vmatprep.subr.mxu0 0.0
      %386 = vmatpush1.msra.mxu0 0.0
      %387 = vmatprep.subr.mxu0 0.0
      %388 = vmatpush1.msra.mxu0 0.0
      %389 = vmatprep.subr.mxu0 0.0
      %390 = vmatpush1.msra.mxu0 0.0
      %391 = vmatprep.subr.mxu0 0.0
      %392 = vmatpush1.msra.mxu0 0.0
      %393 = vmatprep.subr.mxu0 0.0
      %394 = vmatpush1.msra.mxu0 0.0
      %395 = vmatprep.mubr.f32.mxu0 0.0
      %396 = vmatmul.mubr.f32.gmra.mrb[0].mxu0 %v259
      %v397 = vpop.f32.mrb[0].mxu0
      %v398 = vadd.f32 0.0, %v397
      %v399 = vpop.f32.mrb[0].mxu0
      %400 = vdwg.mxu0
      %v401 = vld [vmem:[%s196] sm:$0xff]
      %v402 = vld [vmem:[%s196 + $0x8] sm:$0xff]
      %v403 = vld [vmem:[%s196 + $0x10] sm:$0xff]
      %v404 = vadd.f32 %v401, %v327
      %v405 = vxor.u32 %v404, 2147483648
      %v406 = vmul.f32 %v405, 1.442695
      %v407 = vpow.pop %v406
      %v408 = vadd.f32 %v407, 1.0
      %v409 = vrcp.pop %v408
      %v410 = vmul.f32 1.0, %v409
      %v411 = vadd.f32 %v402, %v329
      %v412 = vxor.u32 %v411, 2147483648
      %v413 = vmul.f32 %v412, 1.442695
      %v414 = vpow.pop %v413
      %v415 = vadd.f32 %v414, 1.0
      %v416 = vrcp.pop %v415
      %v417 = vmul.f32 1.0, %v416
      %v419 = vlaneseq
      %v420 = vshrl.u32 %v419, 7
      %v421 = vsub.s32 0, %v420
      %v422 = vrot.slane %v258, %v421
      %v424 = vadd.f32 %v398, %v422
      %v425 = vmul.f32 %v410, %v424
      %v426 = vadd.f32 %v403, %v425
      %v427 = vtanh.pop %v426
      %v428 = vsub.f32 1.0, %v417
      %v429 = vmul.f32 %v428, %v427
      %v430 = vmul.f32 %v417, %v259
      %v431 = vadd.f32 %v429, %v430
      %432 = vst [vmem:[%s202] sm:$0xff] %v431
      %433 = vmatprep.subr.mxu0 %v211
      %434 = vmatpush1.msra.mxu0 %v210
      %435 = vmatprep.subr.mxu0 %v214
      %436 = vmatpush1.msra.mxu0 %v213
      %437 = vmatprep.subr.mxu0 %v217
      %438 = vmatpush1.msra.mxu0 %v216
      %439 = vmatprep.subr.mxu0 %v220
      %440 = vmatpush1.msra.mxu0 %v219
      %441 = vmatprep.subr.mxu0 %v223
      %442 = vmatpush1.msra.mxu0 %v222
      %443 = vmatprep.subr.mxu0 %v226
      %444 = vmatpush1.msra.mxu0 %v225
      %445 = vmatprep.subr.mxu0 %v229
      %446 = vmatpush1.msra.mxu0 %v228
      %447 = vmatprep.subr.mxu0 %v232
      %448 = vmatpush1.msra.mxu0 %v231
      %449 = vmatprep.subr.mxu0 %v235
      %450 = vmatpush1.msra.mxu0 %v234
      %451 = vmatprep.subr.mxu0 %v238
      %452 = vmatpush1.msra.mxu0 %v237
      %453 = vmatprep.subr.mxu0 %v241
      %454 = vmatpush1.msra.mxu0 %v240
      %455 = vmatprep.subr.mxu0 %v244
      %456 = vmatpush1.msra.mxu0 %v243
      %457 = vmatprep.subr.mxu0 %v247
      %458 = vmatpush1.msra.mxu0 %v246
      %459 = vmatprep.subr.mxu0 %v250
      %460 = vmatpush1.msra.mxu0 %v249
      %461 = vmatprep.subr.mxu0 %v253
      %462 = vmatpush1.msra.mxu0 %v252
      %463 = vmatprep.subr.mxu0 %v256
      %464 = vmatpush1.msra.mxu0 %v255
      %465 = vmatprep.subr.mxu0 0.0
      %466 = vmatpush1.msra.mxu0 0.0
      %467 = vmatprep.subr.mxu0 0.0
      %468 = vmatpush1.msra.mxu0 0.0
      %469 = vmatprep.subr.mxu0 0.0
      %470 = vmatpush1.msra.mxu0 0.0
      %471 = vmatprep.subr.mxu0 0.0
      %472 = vmatpush1.msra.mxu0 0.0
      %473 = vmatprep.subr.mxu0 0.0
      %474 = vmatpush1.msra.mxu0 0.0
      %475 = vmatprep.subr.mxu0 0.0
      %476 = vmatpush1.msra.mxu0 0.0
      %477 = vmatprep.subr.mxu0 0.0
      %478 = vmatpush1.msra.mxu0 0.0
      %479 = vmatprep.subr.mxu0 0.0
      %480 = vmatpush1.msra.mxu0 0.0
      %481 = vmatprep.subr.mxu0 0.0
      %482 = vmatpush1.msra.mxu0 0.0
      %483 = vmatprep.subr.mxu0 0.0
      %484 = vmatpush1.msra.mxu0 0.0
      %485 = vmatprep.subr.mxu0 0.0
      %486 = vmatpush1.msra.mxu0 0.0
      %487 = vmatprep.subr.mxu0 0.0
      %488 = vmatpush1.msra.mxu0 0.0
      %489 = vmatprep.subr.mxu0 0.0
      %490 = vmatpush1.msra.mxu0 0.0
      %491 = vmatprep.subr.mxu0 0.0
      %492 = vmatpush1.msra.mxu0 0.0
      %493 = vmatprep.subr.mxu0 0.0
      %494 = vmatpush1.msra.mxu0 0.0
      %495 = vmatprep.subr.mxu0 0.0
      %496 = vmatpush1.msra.mxu0 0.0
      %497 = vmatprep.mubr.f32.mxu0 0.0
      %498 = vmatmul.mubr.f32.gmra.mrb[0].mxu0 %v431
      %v499 = vpop.f32.mrb[0].mxu0
      %v500 = vadd.f32 0.0, %v499
      %v501 = vpop.f32.mrb[0].mxu0
      %v502 = vadd.f32 0.0, %v501
      %503 = vdwg.mxu0
      %504 = vmatprep.subr.mxu0 0.0
      %505 = vmatpush1.msra.mxu0 %v212
      %506 = vmatprep.subr.mxu0 0.0
      %507 = vmatpush1.msra.mxu0 %v215
      %508 = vmatprep.subr.mxu0 0.0
      %509 = vmatpush1.msra.mxu0 %v218
      %510 = vmatprep.subr.mxu0 0.0
      %511 = vmatpush1.msra.mxu0 %v221
      %512 = vmatprep.subr.mxu0 0.0
      %513 = vmatpush1.msra.mxu0 %v224
      %514 = vmatprep.subr.mxu0 0.0
      %515 = vmatpush1.msra.mxu0 %v227
      %516 = vmatprep.subr.mxu0 0.0
      %517 = vmatpush1.msra.mxu0 %v230
      %518 = vmatprep.subr.mxu0 0.0
      %519 = vmatpush1.msra.mxu0 %v233
      %520 = vmatprep.subr.mxu0 0.0
      %521 = vmatpush1.msra.mxu0 %v236
      %522 = vmatprep.subr.mxu0 0.0
      %523 = vmatpush1.msra.mxu0 %v239
      %524 = vmatprep.subr.mxu0 0.0
      %525 = vmatpush1.msra.mxu0 %v242
      %526 = vmatprep.subr.mxu0 0.0
      %527 = vmatpush1.msra.mxu0 %v245
      %528 = vmatprep.subr.mxu0 0.0
      %529 = vmatpush1.msra.mxu0 %v248
      %530 = vmatprep.subr.mxu0 0.0
      %531 = vmatpush1.msra.mxu0 %v251
      %532 = vmatprep.subr.mxu0 0.0
      %533 = vmatpush1.msra.mxu0 %v254
      %534 = vmatprep.subr.mxu0 0.0
      %535 = vmatpush1.msra.mxu0 %v257
      %536 = vmatprep.subr.mxu0 0.0
      %537 = vmatpush1.msra.mxu0 0.0
      %538 = vmatprep.subr.mxu0 0.0
      %539 = vmatpush1.msra.mxu0 0.0
      %540 = vmatprep.subr.mxu0 0.0
      %541 = vmatpush1.msra.mxu0 0.0
      %542 = vmatprep.subr.mxu0 0.0
      %543 = vmatpush1.msra.mxu0 0.0
      %544 = vmatprep.subr.mxu0 0.0
      %545 = vmatpush1.msra.mxu0 0.0
      %546 = vmatprep.subr.mxu0 0.0
      %547 = vmatpush1.msra.mxu0 0.0
      %548 = vmatprep.subr.mxu0 0.0
      %549 = vmatpush1.msra.mxu0 0.0
      %550 = vmatprep.subr.mxu0 0.0
      %551 = vmatpush1.msra.mxu0 0.0
      %552 = vmatprep.subr.mxu0 0.0
      %553 = vmatpush1.msra.mxu0 0.0
      %554 = vmatprep.subr.mxu0 0.0
      %555 = vmatpush1.msra.mxu0 0.0
      %556 = vmatprep.subr.mxu0 0.0
      %557 = vmatpush1.msra.mxu0 0.0
      %558 = vmatprep.subr.mxu0 0.0
      %559 = vmatpush1.msra.mxu0 0.0
      %560 = vmatprep.subr.mxu0 0.0
      %561 = vmatpush1.msra.mxu0 0.0
      %562 = vmatprep.subr.mxu0 0.0
      %563 = vmatpush1.msra.mxu0 0.0
      %564 = vmatprep.subr.mxu0 0.0
      %565 = vmatpush1.msra.mxu0 0.0
      %566 = vmatprep.subr.mxu0 0.0
      %567 = vmatpush1.msra.mxu0 0.0
      %568 = vmatprep.mubr.f32.mxu0 0.0
      %569 = vmatmul.mubr.f32.gmra.mrb[0].mxu0 %v431
      %v570 = vpop.f32.mrb[0].mxu0
      %v571 = vadd.f32 0.0, %v570
      %v572 = vpop.f32.mrb[0].mxu0
      %573 = vdwg.mxu0
      %s574 = scalar_lea.vmem %s196, 24
      %v575 = vld [vmem:[%s574] sm:$0xff]
      %v576 = vld [vmem:[%s574 + $0x8] sm:$0xff]
      %v577 = vld [vmem:[%s574 + $0x10] sm:$0xff]
      %v578 = vadd.f32 %v575, %v500
      %v579 = vxor.u32 %v578, 2147483648
      %v580 = vmul.f32 %v579, 1.442695
      %v581 = vpow.pop %v580
      %v582 = vadd.f32 %v581, 1.0
      %v583 = vrcp.pop %v582
      %v584 = vmul.f32 1.0, %v583
      %v585 = vadd.f32 %v576, %v502
      %v586 = vxor.u32 %v585, 2147483648
      %v587 = vmul.f32 %v586, 1.442695
      %v588 = vpow.pop %v587
      %v589 = vadd.f32 %v588, 1.0
      %v590 = vrcp.pop %v589
      %v591 = vmul.f32 1.0, %v590
      %v592 = vadd.f32 %v571, %v422
      %v593 = vmul.f32 %v584, %v592
      %v594 = vadd.f32 %v577, %v593
      %v595 = vtanh.pop %v594
      %v596 = vsub.f32 1.0, %v591
      %v597 = vmul.f32 %v596, %v595
      %v598 = vmul.f32 %v591, %v431
      %v599 = vadd.f32 %v597, %v598
      %s600 = scalar_lea.vmem %s202, 8
      %601 = vst [vmem:[%s600] sm:$0xff] %v599
      %602 = vmatprep.subr.mxu0 %v211
      %603 = vmatpush1.msra.mxu0 %v210
      %604 = vmatprep.subr.mxu0 %v214
      %605 = vmatpush1.msra.mxu0 %v213
      %606 = vmatprep.subr.mxu0 %v217
      %607 = vmatpush1.msra.mxu0 %v216
      %608 = vmatprep.subr.mxu0 %v220
      %609 = vmatpush1.msra.mxu0 %v219
      %610 = vmatprep.subr.mxu0 %v223
      %611 = vmatpush1.msra.mxu0 %v222
      %612 = vmatprep.subr.mxu0 %v226
      %613 = vmatpush1.msra.mxu0 %v225
      %614 = vmatprep.subr.mxu0 %v229
      %615 = vmatpush1.msra.mxu0 %v228
      %616 = vmatprep.subr.mxu0 %v232
      %617 = vmatpush1.msra.mxu0 %v231
      %618 = vmatprep.subr.mxu0 %v235
      %619 = vmatpush1.msra.mxu0 %v234
      %620 = vmatprep.subr.mxu0 %v238
      %621 = vmatpush1.msra.mxu0 %v237
      %622 = vmatprep.subr.mxu0 %v241
      %623 = vmatpush1.msra.mxu0 %v240
      %624 = vmatprep.subr.mxu0 %v244
      %625 = vmatpush1.msra.mxu0 %v243
      %626 = vmatprep.subr.mxu0 %v247
      %627 = vmatpush1.msra.mxu0 %v246
      %628 = vmatprep.subr.mxu0 %v250
      %629 = vmatpush1.msra.mxu0 %v249
      %630 = vmatprep.subr.mxu0 %v253
      %631 = vmatpush1.msra.mxu0 %v252
      %632 = vmatprep.subr.mxu0 %v256
      %633 = vmatpush1.msra.mxu0 %v255
      %634 = vmatprep.subr.mxu0 0.0
      %635 = vmatpush1.msra.mxu0 0.0
      %636 = vmatprep.subr.mxu0 0.0
      %637 = vmatpush1.msra.mxu0 0.0
      %638 = vmatprep.subr.mxu0 0.0
      %639 = vmatpush1.msra.mxu0 0.0
      %640 = vmatprep.subr.mxu0 0.0
      %641 = vmatpush1.msra.mxu0 0.0
      %642 = vmatprep.subr.mxu0 0.0
      %643 = vmatpush1.msra.mxu0 0.0
      %644 = vmatprep.subr.mxu0 0.0
      %645 = vmatpush1.msra.mxu0 0.0
      %646 = vmatprep.subr.mxu0 0.0
      %647 = vmatpush1.msra.mxu0 0.0
      %648 = vmatprep.subr.mxu0 0.0
      %649 = vmatpush1.msra.mxu0 0.0
      %650 = vmatprep.subr.mxu0 0.0
      %651 = vmatpush1.msra.mxu0 0.0
      %652 = vmatprep.subr.mxu0 0.0
      %653 = vmatpush1.msra.mxu0 0.0
      %654 = vmatprep.subr.mxu0 0.0
      %655 = vmatpush1.msra.mxu0 0.0
      %656 = vmatprep.subr.mxu0 0.0
      %657 = vmatpush1.msra.mxu0 0.0
      %658 = vmatprep.subr.mxu0 0.0
      %659 = vmatpush1.msra.mxu0 0.0
      %660 = vmatprep.subr.mxu0 0.0
      %661 = vmatpush1.msra.mxu0 0.0
      %662 = vmatprep.subr.mxu0 0.0
      %663 = vmatpush1.msra.mxu0 0.0
      %664 = vmatprep.subr.mxu0 0.0
      %665 = vmatpush1.msra.mxu0 0.0
      %666 = vmatprep.mubr.f32.mxu0 0.0
      %667 = vmatmul.mubr.f32.gmra.mrb[0].mxu0 %v599
      %v668 = vpop.f32.mrb[0].mxu0
      %v669 = vadd.f32 0.0, %v668
      %v670 = vpop.f32.mrb[0].mxu0
      %v671 = vadd.f32 0.0, %v670
      %672 = vdwg.mxu0
      %673 = vmatprep.subr.mxu0 0.0
      %674 = vmatpush1.msra.mxu0 %v212
      %675 = vmatprep.subr.mxu0 0.0
      %676 = vmatpush1.msra.mxu0 %v215
      %677 = vmatprep.subr.mxu0 0.0
      %678 = vmatpush1.msra.mxu0 %v218
      %679 = vmatprep.subr.mxu0 0.0
      %680 = vmatpush1.msra.mxu0 %v221
      %681 = vmatprep.subr.mxu0 0.0
      %682 = vmatpush1.msra.mxu0 %v224
      %683 = vmatprep.subr.mxu0 0.0
      %684 = vmatpush1.msra.mxu0 %v227
      %685 = vmatprep.subr.mxu0 0.0
      %686 = vmatpush1.msra.mxu0 %v230
      %687 = vmatprep.subr.mxu0 0.0
      %688 = vmatpush1.msra.mxu0 %v233
      %689 = vmatprep.subr.mxu0 0.0
      %690 = vmatpush1.msra.mxu0 %v236
      %691 = vmatprep.subr.mxu0 0.0
      %692 = vmatpush1.msra.mxu0 %v239
      %693 = vmatprep.subr.mxu0 0.0
      %694 = vmatpush1.msra.mxu0 %v242
      %695 = vmatprep.subr.mxu0 0.0
      %696 = vmatpush1.msra.mxu0 %v245
      %697 = vmatprep.subr.mxu0 0.0
      %698 = vmatpush1.msra.mxu0 %v248
      %699 = vmatprep.subr.mxu0 0.0
      %700 = vmatpush1.msra.mxu0 %v251
      %701 = vmatprep.subr.mxu0 0.0
      %702 = vmatpush1.msra.mxu0 %v254
      %703 = vmatprep.subr.mxu0 0.0
      %704 = vmatpush1.msra.mxu0 %v257
      %705 = vmatprep.subr.mxu0 0.0
      %706 = vmatpush1.msra.mxu0 0.0
      %707 = vmatprep.subr.mxu0 0.0
      %708 = vmatpush1.msra.mxu0 0.0
      %709 = vmatprep.subr.mxu0 0.0
      %710 = vmatpush1.msra.mxu0 0.0
      %711 = vmatprep.subr.mxu0 0.0
      %712 = vmatpush1.msra.mxu0 0.0
      %713 = vmatprep.subr.mxu0 0.0
      %714 = vmatpush1.msra.mxu0 0.0
      %715 = vmatprep.subr.mxu0 0.0
      %716 = vmatpush1.msra.mxu0 0.0
      %717 = vmatprep.subr.mxu0 0.0
      %718 = vmatpush1.msra.mxu0 0.0
      %719 = vmatprep.subr.mxu0 0.0
      %720 = vmatpush1.msra.mxu0 0.0
      %721 = vmatprep.subr.mxu0 0.0
      %722 = vmatpush1.msra.mxu0 0.0
      %723 = vmatprep.subr.mxu0 0.0
      %724 = vmatpush1.msra.mxu0 0.0
      %725 = vmatprep.subr.mxu0 0.0
      %726 = vmatpush1.msra.mxu0 0.0
      %727 = vmatprep.subr.mxu0 0.0
      %728 = vmatpush1.msra.mxu0 0.0
      %729 = vmatprep.subr.mxu0 0.0
      %730 = vmatpush1.msra.mxu0 0.0
      %731 = vmatprep.subr.mxu0 0.0
      %732 = vmatpush1.msra.mxu0 0.0
      %733 = vmatprep.subr.mxu0 0.0
      %734 = vmatpush1.msra.mxu0 0.0
      %735 = vmatprep.subr.mxu0 0.0
      %736 = vmatpush1.msra.mxu0 0.0
      %737 = vmatprep.mubr.f32.mxu0 0.0
      %738 = vmatmul.mubr.f32.gmra.mrb[0].mxu0 %v599
      %v739 = vpop.f32.mrb[0].mxu0
      %v740 = vadd.f32 0.0, %v739
      %v741 = vpop.f32.mrb[0].mxu0
      %742 = vdwg.mxu0
      %s743 = scalar_lea.vmem %s196, 48
      %v744 = vld [vmem:[%s743] sm:$0xff]
      %v745 = vld [vmem:[%s743 + $0x8] sm:$0xff]
      %v746 = vld [vmem:[%s743 + $0x10] sm:$0xff]
      %v747 = vadd.f32 %v744, %v669
      %v748 = vxor.u32 %v747, 2147483648
      %v749 = vmul.f32 %v748, 1.442695
      %v750 = vpow.pop %v749
      %v751 = vadd.f32 %v750, 1.0
      %v752 = vrcp.pop %v751
      %v753 = vmul.f32 1.0, %v752
      %v754 = vadd.f32 %v745, %v671
      %v755 = vxor.u32 %v754, 2147483648
      %v756 = vmul.f32 %v755, 1.442695
      %v757 = vpow.pop %v756
      %v758 = vadd.f32 %v757, 1.0
      %v759 = vrcp.pop %v758
      %v760 = vmul.f32 1.0, %v759
      %v761 = vadd.f32 %v740, %v422
      %v762 = vmul.f32 %v753, %v761
      %v763 = vadd.f32 %v746, %v762
      %v764 = vtanh.pop %v763
      %v765 = vsub.f32 1.0, %v760
      %v766 = vmul.f32 %v765, %v764
      %v767 = vmul.f32 %v760, %v599
      %v768 = vadd.f32 %v766, %v767
      %s769 = scalar_lea.vmem %s202, 16
      %770 = vst [vmem:[%s769] sm:$0xff] %v768
      %771 = vmatprep.subr.mxu0 %v211
      %772 = vmatpush1.msra.mxu0 %v210
      %773 = vmatprep.subr.mxu0 %v214
      %774 = vmatpush1.msra.mxu0 %v213
      %775 = vmatprep.subr.mxu0 %v217
      %776 = vmatpush1.msra.mxu0 %v216
      %777 = vmatprep.subr.mxu0 %v220
      %778 = vmatpush1.msra.mxu0 %v219
      %779 = vmatprep.subr.mxu0 %v223
      %780 = vmatpush1.msra.mxu0 %v222
      %781 = vmatprep.subr.mxu0 %v226
      %782 = vmatpush1.msra.mxu0 %v225
      %783 = vmatprep.subr.mxu0 %v229
      %784 = vmatpush1.msra.mxu0 %v228
      %785 = vmatprep.subr.mxu0 %v232
      %786 = vmatpush1.msra.mxu0 %v231
      %787 = vmatprep.subr.mxu0 %v235
      %788 = vmatpush1.msra.mxu0 %v234
      %789 = vmatprep.subr.mxu0 %v238
      %790 = vmatpush1.msra.mxu0 %v237
      %791 = vmatprep.subr.mxu0 %v241
      %792 = vmatpush1.msra.mxu0 %v240
      %793 = vmatprep.subr.mxu0 %v244
      %794 = vmatpush1.msra.mxu0 %v243
      %795 = vmatprep.subr.mxu0 %v247
      %796 = vmatpush1.msra.mxu0 %v246
      %797 = vmatprep.subr.mxu0 %v250
      %798 = vmatpush1.msra.mxu0 %v249
      %799 = vmatprep.subr.mxu0 %v253
      %800 = vmatpush1.msra.mxu0 %v252
      %801 = vmatprep.subr.mxu0 %v256
      %802 = vmatpush1.msra.mxu0 %v255
      %803 = vmatprep.subr.mxu0 0.0
      %804 = vmatpush1.msra.mxu0 0.0
      %805 = vmatprep.subr.mxu0 0.0
      %806 = vmatpush1.msra.mxu0 0.0
      %807 = vmatprep.subr.mxu0 0.0
      %808 = vmatpush1.msra.mxu0 0.0
      %809 = vmatprep.subr.mxu0 0.0
      %810 = vmatpush1.msra.mxu0 0.0
      %811 = vmatprep.subr.mxu0 0.0
      %812 = vmatpush1.msra.mxu0 0.0
      %813 = vmatprep.subr.mxu0 0.0
      %814 = vmatpush1.msra.mxu0 0.0
      %815 = vmatprep.subr.mxu0 0.0
      %816 = vmatpush1.msra.mxu0 0.0
      %817 = vmatprep.subr.mxu0 0.0
      %818 = vmatpush1.msra.mxu0 0.0
      %819 = vmatprep.subr.mxu0 0.0
      %820 = vmatpush1.msra.mxu0 0.0
      %821 = vmatprep.subr.mxu0 0.0
      %822 = vmatpush1.msra.mxu0 0.0
      %823 = vmatprep.subr.mxu0 0.0
      %824 = vmatpush1.msra.mxu0 0.0
      %825 = vmatprep.subr.mxu0 0.0
      %826 = vmatpush1.msra.mxu0 0.0
      %827 = vmatprep.subr.mxu0 0.0
      %828 = vmatpush1.msra.mxu0 0.0
      %829 = vmatprep.subr.mxu0 0.0
      %830 = vmatpush1.msra.mxu0 0.0
      %831 = vmatprep.subr.mxu0 0.0
      %832 = vmatpush1.msra.mxu0 0.0
      %833 = vmatprep.subr.mxu0 0.0
      %834 = vmatpush1.msra.mxu0 0.0
      %835 = vmatprep.mubr.f32.mxu0 0.0
      %836 = vmatmul.mubr.f32.gmra.mrb[0].mxu0 %v768
      %v837 = vpop.f32.mrb[0].mxu0
      %v838 = vadd.f32 0.0, %v837
      %v839 = vpop.f32.mrb[0].mxu0
      %v840 = vadd.f32 0.0, %v839
      %841 = vdwg.mxu0
      %842 = vmatprep.subr.mxu0 0.0
      %843 = vmatpush1.msra.mxu0 %v212
      %844 = vmatprep.subr.mxu0 0.0
      %845 = vmatpush1.msra.mxu0 %v215
      %846 = vmatprep.subr.mxu0 0.0
      %847 = vmatpush1.msra.mxu0 %v218
      %848 = vmatprep.subr.mxu0 0.0
      %849 = vmatpush1.msra.mxu0 %v221
      %850 = vmatprep.subr.mxu0 0.0
      %851 = vmatpush1.msra.mxu0 %v224
      %852 = vmatprep.subr.mxu0 0.0
      %853 = vmatpush1.msra.mxu0 %v227
      %854 = vmatprep.subr.mxu0 0.0
      %855 = vmatpush1.msra.mxu0 %v230
      %856 = vmatprep.subr.mxu0 0.0
      %857 = vmatpush1.msra.mxu0 %v233
      %858 = vmatprep.subr.mxu0 0.0
      %859 = vmatpush1.msra.mxu0 %v236
      %860 = vmatprep.subr.mxu0 0.0
      %861 = vmatpush1.msra.mxu0 %v239
      %862 = vmatprep.subr.mxu0 0.0
      %863 = vmatpush1.msra.mxu0 %v242
      %864 = vmatprep.subr.mxu0 0.0
      %865 = vmatpush1.msra.mxu0 %v245
      %866 = vmatprep.subr.mxu0 0.0
      %867 = vmatpush1.msra.mxu0 %v248
      %868 = vmatprep.subr.mxu0 0.0
      %869 = vmatpush1.msra.mxu0 %v251
      %870 = vmatprep.subr.mxu0 0.0
      %871 = vmatpush1.msra.mxu0 %v254
      %872 = vmatprep.subr.mxu0 0.0
      %873 = vmatpush1.msra.mxu0 %v257
      %874 = vmatprep.subr.mxu0 0.0
      %875 = vmatpush1.msra.mxu0 0.0
      %876 = vmatprep.subr.mxu0 0.0
      %877 = vmatpush1.msra.mxu0 0.0
      %878 = vmatprep.subr.mxu0 0.0
      %879 = vmatpush1.msra.mxu0 0.0
      %880 = vmatprep.subr.mxu0 0.0
      %881 = vmatpush1.msra.mxu0 0.0
      %882 = vmatprep.subr.mxu0 0.0
      %883 = vmatpush1.msra.mxu0 0.0
      %884 = vmatprep.subr.mxu0 0.0
      %885 = vmatpush1.msra.mxu0 0.0
      %886 = vmatprep.subr.mxu0 0.0
      %887 = vmatpush1.msra.mxu0 0.0
      %888 = vmatprep.subr.mxu0 0.0
      %889 = vmatpush1.msra.mxu0 0.0
      %890 = vmatprep.subr.mxu0 0.0
      %891 = vmatpush1.msra.mxu0 0.0
      %892 = vmatprep.subr.mxu0 0.0
      %893 = vmatpush1.msra.mxu0 0.0
      %894 = vmatprep.subr.mxu0 0.0
      %895 = vmatpush1.msra.mxu0 0.0
      %896 = vmatprep.subr.mxu0 0.0
      %897 = vmatpush1.msra.mxu0 0.0
      %898 = vmatprep.subr.mxu0 0.0
      %899 = vmatpush1.msra.mxu0 0.0
      %900 = vmatprep.subr.mxu0 0.0
      %901 = vmatpush1.msra.mxu0 0.0
      %902 = vmatprep.subr.mxu0 0.0
      %903 = vmatpush1.msra.mxu0 0.0
      %904 = vmatprep.subr.mxu0 0.0
      %905 = vmatpush1.msra.mxu0 0.0
      %906 = vmatprep.mubr.f32.mxu0 0.0
      %907 = vmatmul.mubr.f32.gmra.mrb[0].mxu0 %v768
      %v908 = vpop.f32.mrb[0].mxu0
      %v909 = vadd.f32 0.0, %v908
      %v910 = vpop.f32.mrb[0].mxu0
      %911 = vdwg.mxu0
      %s912 = scalar_lea.vmem %s196, 72
      %v913 = vld [vmem:[%s912] sm:$0xff]
      %v914 = vld [vmem:[%s912 + $0x8] sm:$0xff]
      %v915 = vld [vmem:[%s912 + $0x10] sm:$0xff]
      %v916 = vadd.f32 %v913, %v838
      %v917 = vxor.u32 %v916, 2147483648
      %v918 = vmul.f32 %v917, 1.442695
      %v919 = vpow.pop %v918
      %v920 = vadd.f32 %v919, 1.0
      %v921 = vrcp.pop %v920
      %v922 = vmul.f32 1.0, %v921
      %v923 = vadd.f32 %v914, %v840
      %v924 = vxor.u32 %v923, 2147483648
      %v925 = vmul.f32 %v924, 1.442695
      %v926 = vpow.pop %v925
      %v927 = vadd.f32 %v926, 1.0
      %v928 = vrcp.pop %v927
      %v929 = vmul.f32 1.0, %v928
      %v930 = vadd.f32 %v909, %v422
      %v931 = vmul.f32 %v922, %v930
      %v932 = vadd.f32 %v915, %v931
      %v933 = vtanh.pop %v932
      %v934 = vsub.f32 1.0, %v929
      %v935 = vmul.f32 %v934, %v933
      %v936 = vmul.f32 %v929, %v768
      %v937 = vadd.f32 %v935, %v936
      %s938 = scalar_lea.vmem %s202, 24
      %939 = vst [vmem:[%s938] sm:$0xff] %v937
      %940 = vmatprep.subr.mxu0 %v211
      %941 = vmatpush1.msra.mxu0 %v210
      %942 = vmatprep.subr.mxu0 %v214
      %943 = vmatpush1.msra.mxu0 %v213
      %944 = vmatprep.subr.mxu0 %v217
      %945 = vmatpush1.msra.mxu0 %v216
      %946 = vmatprep.subr.mxu0 %v220
      %947 = vmatpush1.msra.mxu0 %v219
      %948 = vmatprep.subr.mxu0 %v223
      %949 = vmatpush1.msra.mxu0 %v222
      %950 = vmatprep.subr.mxu0 %v226
      %951 = vmatpush1.msra.mxu0 %v225
      %952 = vmatprep.subr.mxu0 %v229
      %953 = vmatpush1.msra.mxu0 %v228
      %954 = vmatprep.subr.mxu0 %v232
      %955 = vmatpush1.msra.mxu0 %v231
      %956 = vmatprep.subr.mxu0 %v235
      %957 = vmatpush1.msra.mxu0 %v234
      %958 = vmatprep.subr.mxu0 %v238
      %959 = vmatpush1.msra.mxu0 %v237
      %960 = vmatprep.subr.mxu0 %v241
      %961 = vmatpush1.msra.mxu0 %v240
      %962 = vmatprep.subr.mxu0 %v244
      %963 = vmatpush1.msra.mxu0 %v243
      %964 = vmatprep.subr.mxu0 %v247
      %965 = vmatpush1.msra.mxu0 %v246
      %966 = vmatprep.subr.mxu0 %v250
      %967 = vmatpush1.msra.mxu0 %v249
      %968 = vmatprep.subr.mxu0 %v253
      %969 = vmatpush1.msra.mxu0 %v252
      %970 = vmatprep.subr.mxu0 %v256
      %971 = vmatpush1.msra.mxu0 %v255
      %972 = vmatprep.subr.mxu0 0.0
      %973 = vmatpush1.msra.mxu0 0.0
      %974 = vmatprep.subr.mxu0 0.0
      %975 = vmatpush1.msra.mxu0 0.0
      %976 = vmatprep.subr.mxu0 0.0
      %977 = vmatpush1.msra.mxu0 0.0
      %978 = vmatprep.subr.mxu0 0.0
      %979 = vmatpush1.msra.mxu0 0.0
      %980 = vmatprep.subr.mxu0 0.0
      %981 = vmatpush1.msra.mxu0 0.0
      %982 = vmatprep.subr.mxu0 0.0
      %983 = vmatpush1.msra.mxu0 0.0
      %984 = vmatprep.subr.mxu0 0.0
      %985 = vmatpush1.msra.mxu0 0.0
      %986 = vmatprep.subr.mxu0 0.0
      %987 = vmatpush1.msra.mxu0 0.0
      %988 = vmatprep.subr.mxu0 0.0
      %989 = vmatpush1.msra.mxu0 0.0
      %990 = vmatprep.subr.mxu0 0.0
      %991 = vmatpush1.msra.mxu0 0.0
      %992 = vmatprep.subr.mxu0 0.0
      %993 = vmatpush1.msra.mxu0 0.0
      %994 = vmatprep.subr.mxu0 0.0
      %995 = vmatpush1.msra.mxu0 0.0
      %996 = vmatprep.subr.mxu0 0.0
      %997 = vmatpush1.msra.mxu0 0.0
      %998 = vmatprep.subr.mxu0 0.0
      %999 = vmatpush1.msra.mxu0 0.0
      %1000 = vmatprep.subr.mxu0 0.0
      %1001 = vmatpush1.msra.mxu0 0.0
      %1002 = vmatprep.subr.mxu0 0.0
      %1003 = vmatpush1.msra.mxu0 0.0
      %1004 = vmatprep.mubr.f32.mxu0 0.0
      %1005 = vmatmul.mubr.f32.gmra.mrb[0].mxu0 %v937
      %v1006 = vpop.f32.mrb[0].mxu0
      %v1007 = vadd.f32 0.0, %v1006
      %v1008 = vpop.f32.mrb[0].mxu0
      %v1009 = vadd.f32 0.0, %v1008
      %1010 = vdwg.mxu0
      %1011 = vmatprep.subr.mxu0 0.0
      %1012 = vmatpush1.msra.mxu0 %v212
      %1013 = vmatprep.subr.mxu0 0.0
      %1014 = vmatpush1.msra.mxu0 %v215
      %1015 = vmatprep.subr.mxu0 0.0
      %1016 = vmatpush1.msra.mxu0 %v218
      %1017 = vmatprep.subr.mxu0 0.0
      %1018 = vmatpush1.msra.mxu0 %v221
      %1019 = vmatprep.subr.mxu0 0.0
      %1020 = vmatpush1.msra.mxu0 %v224
      %1021 = vmatprep.subr.mxu0 0.0
      %1022 = vmatpush1.msra.mxu0 %v227
      %1023 = vmatprep.subr.mxu0 0.0
      %1024 = vmatpush1.msra.mxu0 %v230
      %1025 = vmatprep.subr.mxu0 0.0
      %1026 = vmatpush1.msra.mxu0 %v233
      %1027 = vmatprep.subr.mxu0 0.0
      %1028 = vmatpush1.msra.mxu0 %v236
      %1029 = vmatprep.subr.mxu0 0.0
      %1030 = vmatpush1.msra.mxu0 %v239
      %1031 = vmatprep.subr.mxu0 0.0
      %1032 = vmatpush1.msra.mxu0 %v242
      %1033 = vmatprep.subr.mxu0 0.0
      %1034 = vmatpush1.msra.mxu0 %v245
      %1035 = vmatprep.subr.mxu0 0.0
      %1036 = vmatpush1.msra.mxu0 %v248
      %1037 = vmatprep.subr.mxu0 0.0
      %1038 = vmatpush1.msra.mxu0 %v251
      %1039 = vmatprep.subr.mxu0 0.0
      %1040 = vmatpush1.msra.mxu0 %v254
      %1041 = vmatprep.subr.mxu0 0.0
      %1042 = vmatpush1.msra.mxu0 %v257
      %1043 = vmatprep.subr.mxu0 0.0
      %1044 = vmatpush1.msra.mxu0 0.0
      %1045 = vmatprep.subr.mxu0 0.0
      %1046 = vmatpush1.msra.mxu0 0.0
      %1047 = vmatprep.subr.mxu0 0.0
      %1048 = vmatpush1.msra.mxu0 0.0
      %1049 = vmatprep.subr.mxu0 0.0
      %1050 = vmatpush1.msra.mxu0 0.0
      %1051 = vmatprep.subr.mxu0 0.0
      %1052 = vmatpush1.msra.mxu0 0.0
      %1053 = vmatprep.subr.mxu0 0.0
      %1054 = vmatpush1.msra.mxu0 0.0
      %1055 = vmatprep.subr.mxu0 0.0
      %1056 = vmatpush1.msra.mxu0 0.0
      %1057 = vmatprep.subr.mxu0 0.0
      %1058 = vmatpush1.msra.mxu0 0.0
      %1059 = vmatprep.subr.mxu0 0.0
      %1060 = vmatpush1.msra.mxu0 0.0
      %1061 = vmatprep.subr.mxu0 0.0
      %1062 = vmatpush1.msra.mxu0 0.0
      %1063 = vmatprep.subr.mxu0 0.0
      %1064 = vmatpush1.msra.mxu0 0.0
      %1065 = vmatprep.subr.mxu0 0.0
      %1066 = vmatpush1.msra.mxu0 0.0
      %1067 = vmatprep.subr.mxu0 0.0
      %1068 = vmatpush1.msra.mxu0 0.0
      %1069 = vmatprep.subr.mxu0 0.0
      %1070 = vmatpush1.msra.mxu0 0.0
      %1071 = vmatprep.subr.mxu0 0.0
      %1072 = vmatpush1.msra.mxu0 0.0
      %1073 = vmatprep.subr.mxu0 0.0
      %1074 = vmatpush1.msra.mxu0 0.0
      %1075 = vmatprep.mubr.f32.mxu0 0.0
      %1076 = vmatmul.mubr.f32.gmra.mrb[0].mxu0 %v937
      %v1077 = vpop.f32.mrb[0].mxu0
      %v1078 = vadd.f32 0.0, %v1077
      %v1079 = vpop.f32.mrb[0].mxu0
      %1080 = vdwg.mxu0
      %s1081 = scalar_lea.vmem %s196, 96
      %v1082 = vld [vmem:[%s1081] sm:$0xff]
      %v1083 = vld [vmem:[%s1081 + $0x8] sm:$0xff]
      %v1084 = vld [vmem:[%s1081 + $0x10] sm:$0xff]
      %v1085 = vadd.f32 %v1082, %v1007
      %v1086 = vxor.u32 %v1085, 2147483648
      %v1087 = vmul.f32 %v1086, 1.442695
      %v1088 = vpow.pop %v1087
      %v1089 = vadd.f32 %v1088, 1.0
      %v1090 = vrcp.pop %v1089
      %v1091 = vmul.f32 1.0, %v1090
      %v1092 = vadd.f32 %v1083, %v1009
      %v1093 = vxor.u32 %v1092, 2147483648
      %v1094 = vmul.f32 %v1093, 1.442695
      %v1095 = vpow.pop %v1094
      %v1096 = vadd.f32 %v1095, 1.0
      %v1097 = vrcp.pop %v1096
      %v1098 = vmul.f32 1.0, %v1097
      %v1099 = vadd.f32 %v1078, %v422
      %v1100 = vmul.f32 %v1091, %v1099
      %v1101 = vadd.f32 %v1084, %v1100
      %v1102 = vtanh.pop %v1101
      %v1103 = vsub.f32 1.0, %v1098
      %v1104 = vmul.f32 %v1103, %v1102
      %v1105 = vmul.f32 %v1098, %v937
      %v1106 = vadd.f32 %v1104, %v1105
      %s1107 = scalar_lea.vmem %s202, 32
      %1108 = vst [vmem:[%s1107] sm:$0xff] %v1106
      %1109 = vmatprep.subr.mxu0 %v211
      %1110 = vmatpush1.msra.mxu0 %v210
      %1111 = vmatprep.subr.mxu0 %v214
      %1112 = vmatpush1.msra.mxu0 %v213
      %1113 = vmatprep.subr.mxu0 %v217
      %1114 = vmatpush1.msra.mxu0 %v216
      %1115 = vmatprep.subr.mxu0 %v220
      %1116 = vmatpush1.msra.mxu0 %v219
      %1117 = vmatprep.subr.mxu0 %v223
      %1118 = vmatpush1.msra.mxu0 %v222
      %1119 = vmatprep.subr.mxu0 %v226
      %1120 = vmatpush1.msra.mxu0 %v225
      %1121 = vmatprep.subr.mxu0 %v229
      %1122 = vmatpush1.msra.mxu0 %v228
      %1123 = vmatprep.subr.mxu0 %v232
      %1124 = vmatpush1.msra.mxu0 %v231
      %1125 = vmatprep.subr.mxu0 %v235
      %1126 = vmatpush1.msra.mxu0 %v234
      %1127 = vmatprep.subr.mxu0 %v238
      %1128 = vmatpush1.msra.mxu0 %v237
      %1129 = vmatprep.subr.mxu0 %v241
      %1130 = vmatpush1.msra.mxu0 %v240
      %1131 = vmatprep.subr.mxu0 %v244
      %1132 = vmatpush1.msra.mxu0 %v243
      %1133 = vmatprep.subr.mxu0 %v247
      %1134 = vmatpush1.msra.mxu0 %v246
      %1135 = vmatprep.subr.mxu0 %v250
      %1136 = vmatpush1.msra.mxu0 %v249
      %1137 = vmatprep.subr.mxu0 %v253
      %1138 = vmatpush1.msra.mxu0 %v252
      %1139 = vmatprep.subr.mxu0 %v256
      %1140 = vmatpush1.msra.mxu0 %v255
      %1141 = vmatprep.subr.mxu0 0.0
      %1142 = vmatpush1.msra.mxu0 0.0
      %1143 = vmatprep.subr.mxu0 0.0
      %1144 = vmatpush1.msra.mxu0 0.0
      %1145 = vmatprep.subr.mxu0 0.0
      %1146 = vmatpush1.msra.mxu0 0.0
      %1147 = vmatprep.subr.mxu0 0.0
      %1148 = vmatpush1.msra.mxu0 0.0
      %1149 = vmatprep.subr.mxu0 0.0
      %1150 = vmatpush1.msra.mxu0 0.0
      %1151 = vmatprep.subr.mxu0 0.0
      %1152 = vmatpush1.msra.mxu0 0.0
      %1153 = vmatprep.subr.mxu0 0.0
      %1154 = vmatpush1.msra.mxu0 0.0
      %1155 = vmatprep.subr.mxu0 0.0
      %1156 = vmatpush1.msra.mxu0 0.0
      %1157 = vmatprep.subr.mxu0 0.0
      %1158 = vmatpush1.msra.mxu0 0.0
      %1159 = vmatprep.subr.mxu0 0.0
      %1160 = vmatpush1.msra.mxu0 0.0
      %1161 = vmatprep.subr.mxu0 0.0
      %1162 = vmatpush1.msra.mxu0 0.0
      %1163 = vmatprep.subr.mxu0 0.0
      %1164 = vmatpush1.msra.mxu0 0.0
      %1165 = vmatprep.subr.mxu0 0.0
      %1166 = vmatpush1.msra.mxu0 0.0
      %1167 = vmatprep.subr.mxu0 0.0
      %1168 = vmatpush1.msra.mxu0 0.0
      %1169 = vmatprep.subr.mxu0 0.0
      %1170 = vmatpush1.msra.mxu0 0.0
      %1171 = vmatprep.subr.mxu0 0.0
      %1172 = vmatpush1.msra.mxu0 0.0
      %1173 = vmatprep.mubr.f32.mxu0 0.0
      %1174 = vmatmul.mubr.f32.gmra.mrb[0].mxu0 %v1106
      %v1175 = vpop.f32.mrb[0].mxu0
      %v1176 = vadd.f32 0.0, %v1175
      %v1177 = vpop.f32.mrb[0].mxu0
      %v1178 = vadd.f32 0.0, %v1177
      %1179 = vdwg.mxu0
      %1180 = vmatprep.subr.mxu0 0.0
      %1181 = vmatpush1.msra.mxu0 %v212
      %1182 = vmatprep.subr.mxu0 0.0
      %1183 = vmatpush1.msra.mxu0 %v215
      %1184 = vmatprep.subr.mxu0 0.0
      %1185 = vmatpush1.msra.mxu0 %v218
      %1186 = vmatprep.subr.mxu0 0.0
      %1187 = vmatpush1.msra.mxu0 %v221
      %1188 = vmatprep.subr.mxu0 0.0
      %1189 = vmatpush1.msra.mxu0 %v224
      %1190 = vmatprep.subr.mxu0 0.0
      %1191 = vmatpush1.msra.mxu0 %v227
      %1192 = vmatprep.subr.mxu0 0.0
      %1193 = vmatpush1.msra.mxu0 %v230
      %1194 = vmatprep.subr.mxu0 0.0
      %1195 = vmatpush1.msra.mxu0 %v233
      %1196 = vmatprep.subr.mxu0 0.0
      %1197 = vmatpush1.msra.mxu0 %v236
      %1198 = vmatprep.subr.mxu0 0.0
      %1199 = vmatpush1.msra.mxu0 %v239
      %1200 = vmatprep.subr.mxu0 0.0
      %1201 = vmatpush1.msra.mxu0 %v242
      %1202 = vmatprep.subr.mxu0 0.0
      %1203 = vmatpush1.msra.mxu0 %v245
      %1204 = vmatprep.subr.mxu0 0.0
      %1205 = vmatpush1.msra.mxu0 %v248
      %1206 = vmatprep.subr.mxu0 0.0
      %1207 = vmatpush1.msra.mxu0 %v251
      %1208 = vmatprep.subr.mxu0 0.0
      %1209 = vmatpush1.msra.mxu0 %v254
      %1210 = vmatprep.subr.mxu0 0.0
      %1211 = vmatpush1.msra.mxu0 %v257
      %1212 = vmatprep.subr.mxu0 0.0
      %1213 = vmatpush1.msra.mxu0 0.0
      %1214 = vmatprep.subr.mxu0 0.0
      %1215 = vmatpush1.msra.mxu0 0.0
      %1216 = vmatprep.subr.mxu0 0.0
      %1217 = vmatpush1.msra.mxu0 0.0
      %1218 = vmatprep.subr.mxu0 0.0
      %1219 = vmatpush1.msra.mxu0 0.0
      %1220 = vmatprep.subr.mxu0 0.0
      %1221 = vmatpush1.msra.mxu0 0.0
      %1222 = vmatprep.subr.mxu0 0.0
      %1223 = vmatpush1.msra.mxu0 0.0
      %1224 = vmatprep.subr.mxu0 0.0
      %1225 = vmatpush1.msra.mxu0 0.0
      %1226 = vmatprep.subr.mxu0 0.0
      %1227 = vmatpush1.msra.mxu0 0.0
      %1228 = vmatprep.subr.mxu0 0.0
      %1229 = vmatpush1.msra.mxu0 0.0
      %1230 = vmatprep.subr.mxu0 0.0
      %1231 = vmatpush1.msra.mxu0 0.0
      %1232 = vmatprep.subr.mxu0 0.0
      %1233 = vmatpush1.msra.mxu0 0.0
      %1234 = vmatprep.subr.mxu0 0.0
      %1235 = vmatpush1.msra.mxu0 0.0
      %1236 = vmatprep.subr.mxu0 0.0
      %1237 = vmatpush1.msra.mxu0 0.0
      %1238 = vmatprep.subr.mxu0 0.0
      %1239 = vmatpush1.msra.mxu0 0.0
      %1240 = vmatprep.subr.mxu0 0.0
      %1241 = vmatpush1.msra.mxu0 0.0
      %1242 = vmatprep.subr.mxu0 0.0
      %1243 = vmatpush1.msra.mxu0 0.0
      %1244 = vmatprep.mubr.f32.mxu0 0.0
      %1245 = vmatmul.mubr.f32.gmra.mrb[0].mxu0 %v1106
      %v1246 = vpop.f32.mrb[0].mxu0
      %v1247 = vadd.f32 0.0, %v1246
      %v1248 = vpop.f32.mrb[0].mxu0
      %1249 = vdwg.mxu0
      %s1250 = scalar_lea.vmem %s196, 120
      %v1251 = vld [vmem:[%s1250] sm:$0xff]
      %v1252 = vld [vmem:[%s1250 + $0x8] sm:$0xff]
      %v1253 = vld [vmem:[%s1250 + $0x10] sm:$0xff]
      %v1254 = vadd.f32 %v1251, %v1176
      %v1255 = vxor.u32 %v1254, 2147483648
      %v1256 = vmul.f32 %v1255, 1.442695
      %v1257 = vpow.pop %v1256
      %v1258 = vadd.f32 %v1257, 1.0
      %v1259 = vrcp.pop %v1258
      %v1260 = vmul.f32 1.0, %v1259
      %v1261 = vadd.f32 %v1252, %v1178
      %v1262 = vxor.u32 %v1261, 2147483648
      %v1263 = vmul.f32 %v1262, 1.442695
      %v1264 = vpow.pop %v1263
      %v1265 = vadd.f32 %v1264, 1.0
      %v1266 = vrcp.pop %v1265
      %v1267 = vmul.f32 1.0, %v1266
      %v1268 = vadd.f32 %v1247, %v422
      %v1269 = vmul.f32 %v1260, %v1268
      %v1270 = vadd.f32 %v1253, %v1269
      %v1271 = vtanh.pop %v1270
      %v1272 = vsub.f32 1.0, %v1267
      %v1273 = vmul.f32 %v1272, %v1271
      %v1274 = vmul.f32 %v1267, %v1106
      %v1275 = vadd.f32 %v1273, %v1274
      %s1276 = scalar_lea.vmem %s202, 40
      %1277 = vst [vmem:[%s1276] sm:$0xff] %v1275
      %1278 = vmatprep.subr.mxu0 %v211
      %1279 = vmatpush1.msra.mxu0 %v210
      %1280 = vmatprep.subr.mxu0 %v214
      %1281 = vmatpush1.msra.mxu0 %v213
      %1282 = vmatprep.subr.mxu0 %v217
      %1283 = vmatpush1.msra.mxu0 %v216
      %1284 = vmatprep.subr.mxu0 %v220
      %1285 = vmatpush1.msra.mxu0 %v219
      %1286 = vmatprep.subr.mxu0 %v223
      %1287 = vmatpush1.msra.mxu0 %v222
      %1288 = vmatprep.subr.mxu0 %v226
      %1289 = vmatpush1.msra.mxu0 %v225
      %1290 = vmatprep.subr.mxu0 %v229
      %1291 = vmatpush1.msra.mxu0 %v228
      %1292 = vmatprep.subr.mxu0 %v232
      %1293 = vmatpush1.msra.mxu0 %v231
      %1294 = vmatprep.subr.mxu0 %v235
      %1295 = vmatpush1.msra.mxu0 %v234
      %1296 = vmatprep.subr.mxu0 %v238
      %1297 = vmatpush1.msra.mxu0 %v237
      %1298 = vmatprep.subr.mxu0 %v241
      %1299 = vmatpush1.msra.mxu0 %v240
      %1300 = vmatprep.subr.mxu0 %v244
      %1301 = vmatpush1.msra.mxu0 %v243
      %1302 = vmatprep.subr.mxu0 %v247
      %1303 = vmatpush1.msra.mxu0 %v246
      %1304 = vmatprep.subr.mxu0 %v250
      %1305 = vmatpush1.msra.mxu0 %v249
      %1306 = vmatprep.subr.mxu0 %v253
      %1307 = vmatpush1.msra.mxu0 %v252
      %1308 = vmatprep.subr.mxu0 %v256
      %1309 = vmatpush1.msra.mxu0 %v255
      %1310 = vmatprep.subr.mxu0 0.0
      %1311 = vmatpush1.msra.mxu0 0.0
      %1312 = vmatprep.subr.mxu0 0.0
      %1313 = vmatpush1.msra.mxu0 0.0
      %1314 = vmatprep.subr.mxu0 0.0
      %1315 = vmatpush1.msra.mxu0 0.0
      %1316 = vmatprep.subr.mxu0 0.0
      %1317 = vmatpush1.msra.mxu0 0.0
      %1318 = vmatprep.subr.mxu0 0.0
      %1319 = vmatpush1.msra.mxu0 0.0
      %1320 = vmatprep.subr.mxu0 0.0
      %1321 = vmatpush1.msra.mxu0 0.0
      %1322 = vmatprep.subr.mxu0 0.0
      %1323 = vmatpush1.msra.mxu0 0.0
      %1324 = vmatprep.subr.mxu0 0.0
      %1325 = vmatpush1.msra.mxu0 0.0
      %1326 = vmatprep.subr.mxu0 0.0
      %1327 = vmatpush1.msra.mxu0 0.0
      %1328 = vmatprep.subr.mxu0 0.0
      %1329 = vmatpush1.msra.mxu0 0.0
      %1330 = vmatprep.subr.mxu0 0.0
      %1331 = vmatpush1.msra.mxu0 0.0
      %1332 = vmatprep.subr.mxu0 0.0
      %1333 = vmatpush1.msra.mxu0 0.0
      %1334 = vmatprep.subr.mxu0 0.0
      %1335 = vmatpush1.msra.mxu0 0.0
      %1336 = vmatprep.subr.mxu0 0.0
      %1337 = vmatpush1.msra.mxu0 0.0
      %1338 = vmatprep.subr.mxu0 0.0
      %1339 = vmatpush1.msra.mxu0 0.0
      %1340 = vmatprep.subr.mxu0 0.0
      %1341 = vmatpush1.msra.mxu0 0.0
      %1342 = vmatprep.mubr.f32.mxu0 0.0
      %1343 = vmatmul.mubr.f32.gmra.mrb[0].mxu0 %v1275
      %v1344 = vpop.f32.mrb[0].mxu0
      %v1345 = vadd.f32 0.0, %v1344
      %v1346 = vpop.f32.mrb[0].mxu0
      %v1347 = vadd.f32 0.0, %v1346
      %1348 = vdwg.mxu0
      %1349 = vmatprep.subr.mxu0 0.0
      %1350 = vmatpush1.msra.mxu0 %v212
      %1351 = vmatprep.subr.mxu0 0.0
      %1352 = vmatpush1.msra.mxu0 %v215
      %1353 = vmatprep.subr.mxu0 0.0
      %1354 = vmatpush1.msra.mxu0 %v218
      %1355 = vmatprep.subr.mxu0 0.0
      %1356 = vmatpush1.msra.mxu0 %v221
      %1357 = vmatprep.subr.mxu0 0.0
      %1358 = vmatpush1.msra.mxu0 %v224
      %1359 = vmatprep.subr.mxu0 0.0
      %1360 = vmatpush1.msra.mxu0 %v227
      %1361 = vmatprep.subr.mxu0 0.0
      %1362 = vmatpush1.msra.mxu0 %v230
      %1363 = vmatprep.subr.mxu0 0.0
      %1364 = vmatpush1.msra.mxu0 %v233
      %1365 = vmatprep.subr.mxu0 0.0
      %1366 = vmatpush1.msra.mxu0 %v236
      %1367 = vmatprep.subr.mxu0 0.0
      %1368 = vmatpush1.msra.mxu0 %v239
      %1369 = vmatprep.subr.mxu0 0.0
      %1370 = vmatpush1.msra.mxu0 %v242
      %1371 = vmatprep.subr.mxu0 0.0
      %1372 = vmatpush1.msra.mxu0 %v245
      %1373 = vmatprep.subr.mxu0 0.0
      %1374 = vmatpush1.msra.mxu0 %v248
      %1375 = vmatprep.subr.mxu0 0.0
      %1376 = vmatpush1.msra.mxu0 %v251
      %1377 = vmatprep.subr.mxu0 0.0
      %1378 = vmatpush1.msra.mxu0 %v254
      %1379 = vmatprep.subr.mxu0 0.0
      %1380 = vmatpush1.msra.mxu0 %v257
      %1381 = vmatprep.subr.mxu0 0.0
      %1382 = vmatpush1.msra.mxu0 0.0
      %1383 = vmatprep.subr.mxu0 0.0
      %1384 = vmatpush1.msra.mxu0 0.0
      %1385 = vmatprep.subr.mxu0 0.0
      %1386 = vmatpush1.msra.mxu0 0.0
      %1387 = vmatprep.subr.mxu0 0.0
      %1388 = vmatpush1.msra.mxu0 0.0
      %1389 = vmatprep.subr.mxu0 0.0
      %1390 = vmatpush1.msra.mxu0 0.0
      %1391 = vmatprep.subr.mxu0 0.0
      %1392 = vmatpush1.msra.mxu0 0.0
      %1393 = vmatprep.subr.mxu0 0.0
      %1394 = vmatpush1.msra.mxu0 0.0
      %1395 = vmatprep.subr.mxu0 0.0
      %1396 = vmatpush1.msra.mxu0 0.0
      %1397 = vmatprep.subr.mxu0 0.0
      %1398 = vmatpush1.msra.mxu0 0.0
      %1399 = vmatprep.subr.mxu0 0.0
      %1400 = vmatpush1.msra.mxu0 0.0
      %1401 = vmatprep.subr.mxu0 0.0
      %1402 = vmatpush1.msra.mxu0 0.0
      %1403 = vmatprep.subr.mxu0 0.0
      %1404 = vmatpush1.msra.mxu0 0.0
      %1405 = vmatprep.subr.mxu0 0.0
      %1406 = vmatpush1.msra.mxu0 0.0
      %1407 = vmatprep.subr.mxu0 0.0
      %1408 = vmatpush1.msra.mxu0 0.0
      %1409 = vmatprep.subr.mxu0 0.0
      %1410 = vmatpush1.msra.mxu0 0.0
      %1411 = vmatprep.subr.mxu0 0.0
      %1412 = vmatpush1.msra.mxu0 0.0
      %1413 = vmatprep.mubr.f32.mxu0 0.0
      %1414 = vmatmul.mubr.f32.gmra.mrb[0].mxu0 %v1275
      %v1415 = vpop.f32.mrb[0].mxu0
      %v1416 = vadd.f32 0.0, %v1415
      %v1417 = vpop.f32.mrb[0].mxu0
      %1418 = vdwg.mxu0
      %s1419 = scalar_lea.vmem %s196, 144
      %v1420 = vld [vmem:[%s1419] sm:$0xff]
      %v1421 = vld [vmem:[%s1419 + $0x8] sm:$0xff]
      %v1422 = vld [vmem:[%s1419 + $0x10] sm:$0xff]
      %v1423 = vadd.f32 %v1420, %v1345
      %v1424 = vxor.u32 %v1423, 2147483648
      %v1425 = vmul.f32 %v1424, 1.442695
      %v1426 = vpow.pop %v1425
      %v1427 = vadd.f32 %v1426, 1.0
      %v1428 = vrcp.pop %v1427
      %v1429 = vmul.f32 1.0, %v1428
      %v1430 = vadd.f32 %v1421, %v1347
      %v1431 = vxor.u32 %v1430, 2147483648
      %v1432 = vmul.f32 %v1431, 1.442695
      %v1433 = vpow.pop %v1432
      %v1434 = vadd.f32 %v1433, 1.0
      %v1435 = vrcp.pop %v1434
      %v1436 = vmul.f32 1.0, %v1435
      %v1437 = vadd.f32 %v1416, %v422
      %v1438 = vmul.f32 %v1429, %v1437
      %v1439 = vadd.f32 %v1422, %v1438
      %v1440 = vtanh.pop %v1439
      %v1441 = vsub.f32 1.0, %v1436
      %v1442 = vmul.f32 %v1441, %v1440
      %v1443 = vmul.f32 %v1436, %v1275
      %v1444 = vadd.f32 %v1442, %v1443
      %s1445 = scalar_lea.vmem %s202, 48
      %1446 = vst [vmem:[%s1445] sm:$0xff] %v1444
      %1447 = vmatprep.subr.mxu0 %v211
      %1448 = vmatpush1.msra.mxu0 %v210
      %1449 = vmatprep.subr.mxu0 %v214
      %1450 = vmatpush1.msra.mxu0 %v213
      %1451 = vmatprep.subr.mxu0 %v217
      %1452 = vmatpush1.msra.mxu0 %v216
      %1453 = vmatprep.subr.mxu0 %v220
      %1454 = vmatpush1.msra.mxu0 %v219
      %1455 = vmatprep.subr.mxu0 %v223
      %1456 = vmatpush1.msra.mxu0 %v222
      %1457 = vmatprep.subr.mxu0 %v226
      %1458 = vmatpush1.msra.mxu0 %v225
      %1459 = vmatprep.subr.mxu0 %v229
      %1460 = vmatpush1.msra.mxu0 %v228
      %1461 = vmatprep.subr.mxu0 %v232
      %1462 = vmatpush1.msra.mxu0 %v231
      %1463 = vmatprep.subr.mxu0 %v235
      %1464 = vmatpush1.msra.mxu0 %v234
      %1465 = vmatprep.subr.mxu0 %v238
      %1466 = vmatpush1.msra.mxu0 %v237
      %1467 = vmatprep.subr.mxu0 %v241
      %1468 = vmatpush1.msra.mxu0 %v240
      %1469 = vmatprep.subr.mxu0 %v244
      %1470 = vmatpush1.msra.mxu0 %v243
      %1471 = vmatprep.subr.mxu0 %v247
      %1472 = vmatpush1.msra.mxu0 %v246
      %1473 = vmatprep.subr.mxu0 %v250
      %1474 = vmatpush1.msra.mxu0 %v249
      %1475 = vmatprep.subr.mxu0 %v253
      %1476 = vmatpush1.msra.mxu0 %v252
      %1477 = vmatprep.subr.mxu0 %v256
      %1478 = vmatpush1.msra.mxu0 %v255
      %1479 = vmatprep.subr.mxu0 0.0
      %1480 = vmatpush1.msra.mxu0 0.0
      %1481 = vmatprep.subr.mxu0 0.0
      %1482 = vmatpush1.msra.mxu0 0.0
      %1483 = vmatprep.subr.mxu0 0.0
      %1484 = vmatpush1.msra.mxu0 0.0
      %1485 = vmatprep.subr.mxu0 0.0
      %1486 = vmatpush1.msra.mxu0 0.0
      %1487 = vmatprep.subr.mxu0 0.0
      %1488 = vmatpush1.msra.mxu0 0.0
      %1489 = vmatprep.subr.mxu0 0.0
      %1490 = vmatpush1.msra.mxu0 0.0
      %1491 = vmatprep.subr.mxu0 0.0
      %1492 = vmatpush1.msra.mxu0 0.0
      %1493 = vmatprep.subr.mxu0 0.0
      %1494 = vmatpush1.msra.mxu0 0.0
      %1495 = vmatprep.subr.mxu0 0.0
      %1496 = vmatpush1.msra.mxu0 0.0
      %1497 = vmatprep.subr.mxu0 0.0
      %1498 = vmatpush1.msra.mxu0 0.0
      %1499 = vmatprep.subr.mxu0 0.0
      %1500 = vmatpush1.msra.mxu0 0.0
      %1501 = vmatprep.subr.mxu0 0.0
      %1502 = vmatpush1.msra.mxu0 0.0
      %1503 = vmatprep.subr.mxu0 0.0
      %1504 = vmatpush1.msra.mxu0 0.0
      %1505 = vmatprep.subr.mxu0 0.0
      %1506 = vmatpush1.msra.mxu0 0.0
      %1507 = vmatprep.subr.mxu0 0.0
      %1508 = vmatpush1.msra.mxu0 0.0
      %1509 = vmatprep.subr.mxu0 0.0
      %1510 = vmatpush1.msra.mxu0 0.0
      %1511 = vmatprep.mubr.f32.mxu0 0.0
      %1512 = vmatmul.mubr.f32.gmra.mrb[0].mxu0 %v1444
      %v1513 = vpop.f32.mrb[0].mxu0
      %v1514 = vadd.f32 0.0, %v1513
      %v1515 = vpop.f32.mrb[0].mxu0
      %v1516 = vadd.f32 0.0, %v1515
      %1517 = vdwg.mxu0
      %1518 = vmatprep.subr.mxu0 0.0
      %1519 = vmatpush1.msra.mxu0 %v212
      %1520 = vmatprep.subr.mxu0 0.0
      %1521 = vmatpush1.msra.mxu0 %v215
      %1522 = vmatprep.subr.mxu0 0.0
      %1523 = vmatpush1.msra.mxu0 %v218
      %1524 = vmatprep.subr.mxu0 0.0
      %1525 = vmatpush1.msra.mxu0 %v221
      %1526 = vmatprep.subr.mxu0 0.0
      %1527 = vmatpush1.msra.mxu0 %v224
      %1528 = vmatprep.subr.mxu0 0.0
      %1529 = vmatpush1.msra.mxu0 %v227
      %1530 = vmatprep.subr.mxu0 0.0
      %1531 = vmatpush1.msra.mxu0 %v230
      %1532 = vmatprep.subr.mxu0 0.0
      %1533 = vmatpush1.msra.mxu0 %v233
      %1534 = vmatprep.subr.mxu0 0.0
      %1535 = vmatpush1.msra.mxu0 %v236
      %1536 = vmatprep.subr.mxu0 0.0
      %1537 = vmatpush1.msra.mxu0 %v239
      %1538 = vmatprep.subr.mxu0 0.0
      %1539 = vmatpush1.msra.mxu0 %v242
      %1540 = vmatprep.subr.mxu0 0.0
      %1541 = vmatpush1.msra.mxu0 %v245
      %1542 = vmatprep.subr.mxu0 0.0
      %1543 = vmatpush1.msra.mxu0 %v248
      %1544 = vmatprep.subr.mxu0 0.0
      %1545 = vmatpush1.msra.mxu0 %v251
      %1546 = vmatprep.subr.mxu0 0.0
      %1547 = vmatpush1.msra.mxu0 %v254
      %1548 = vmatprep.subr.mxu0 0.0
      %1549 = vmatpush1.msra.mxu0 %v257
      %1550 = vmatprep.subr.mxu0 0.0
      %1551 = vmatpush1.msra.mxu0 0.0
      %1552 = vmatprep.subr.mxu0 0.0
      %1553 = vmatpush1.msra.mxu0 0.0
      %1554 = vmatprep.subr.mxu0 0.0
      %1555 = vmatpush1.msra.mxu0 0.0
      %1556 = vmatprep.subr.mxu0 0.0
      %1557 = vmatpush1.msra.mxu0 0.0
      %1558 = vmatprep.subr.mxu0 0.0
      %1559 = vmatpush1.msra.mxu0 0.0
      %1560 = vmatprep.subr.mxu0 0.0
      %1561 = vmatpush1.msra.mxu0 0.0
      %1562 = vmatprep.subr.mxu0 0.0
      %1563 = vmatpush1.msra.mxu0 0.0
      %1564 = vmatprep.subr.mxu0 0.0
      %1565 = vmatpush1.msra.mxu0 0.0
      %1566 = vmatprep.subr.mxu0 0.0
      %1567 = vmatpush1.msra.mxu0 0.0
      %1568 = vmatprep.subr.mxu0 0.0
      %1569 = vmatpush1.msra.mxu0 0.0
      %1570 = vmatprep.subr.mxu0 0.0
      %1571 = vmatpush1.msra.mxu0 0.0
      %1572 = vmatprep.subr.mxu0 0.0
      %1573 = vmatpush1.msra.mxu0 0.0
      %1574 = vmatprep.subr.mxu0 0.0
      %1575 = vmatpush1.msra.mxu0 0.0
      %1576 = vmatprep.subr.mxu0 0.0
      %1577 = vmatpush1.msra.mxu0 0.0
      %1578 = vmatprep.subr.mxu0 0.0
      %1579 = vmatpush1.msra.mxu0 0.0
      %1580 = vmatprep.subr.mxu0 0.0
      %1581 = vmatpush1.msra.mxu0 0.0
      %1582 = vmatprep.mubr.f32.mxu0 0.0
      %1583 = vmatmul.mubr.f32.gmra.mrb[0].mxu0 %v1444
      %v1584 = vpop.f32.mrb[0].mxu0
      %v1585 = vadd.f32 0.0, %v1584
      %v1586 = vpop.f32.mrb[0].mxu0
      %1587 = vdwg.mxu0
      %s1588 = scalar_lea.vmem %s196, 168
      %v1589 = vld [vmem:[%s1588] sm:$0xff]
      %v1590 = vld [vmem:[%s1588 + $0x8] sm:$0xff]
      %v1591 = vld [vmem:[%s1588 + $0x10] sm:$0xff]
      %v1592 = vadd.f32 %v1589, %v1514
      %v1593 = vxor.u32 %v1592, 2147483648
      %v1594 = vmul.f32 %v1593, 1.442695
      %v1595 = vpow.pop %v1594
      %v1596 = vadd.f32 %v1595, 1.0
      %v1597 = vrcp.pop %v1596
      %v1598 = vmul.f32 1.0, %v1597
      %v1599 = vadd.f32 %v1590, %v1516
      %v1600 = vxor.u32 %v1599, 2147483648
      %v1601 = vmul.f32 %v1600, 1.442695
      %v1602 = vpow.pop %v1601
      %v1603 = vadd.f32 %v1602, 1.0
      %v1604 = vrcp.pop %v1603
      %v1605 = vmul.f32 1.0, %v1604
      %v1606 = vadd.f32 %v1585, %v422
      %v1607 = vmul.f32 %v1598, %v1606
      %v1608 = vadd.f32 %v1591, %v1607
      %v1609 = vtanh.pop %v1608
      %v1610 = vsub.f32 1.0, %v1605
      %v1611 = vmul.f32 %v1610, %v1609
      %v1612 = vmul.f32 %v1605, %v1444
      %v1613 = vadd.f32 %v1611, %v1612
      %s1614 = scalar_lea.vmem %s202, 56
      %1615 = vst [vmem:[%s1614] sm:$0xff] %v1613
      %1616 = vst [vmem:[#allocation2] sm:$0xff] %v1613
      %s1617 = smul.u32 8, %s15
      %p1618 = scmp.lt.s32.totalorder %s1617, 15
      %s1619 = scalar_select %p1618, %s1617, 15
      %s1620 = smul.addr %s1619, 8
      %s1621 = scalar_lea.vmem %s4, %s1620
      // Predicated region
      $region41: #{my_gru_forward.3} parent=35 // pred_check
        %p1622 = pneg %p122
      $region42: #{my_gru_forward.3} parent=35 // pred_check_branch
        %1624 = sbr.rel (%p1622) target = $region44
      $region43: #{my_gru_forward.3} parent=35 // pred_region
        %s1625 = smul.u32 8, %s15
      $region44: #{my_gru_forward.3} parent=35 // pred_fallthru
        _
    $region36: #{my_gru_forward.3} parent=5 // pred_fallthru
      _
    %p1626 = scmp.le.s32.totalorder 2, %s10
    // Predicated region
    $region45: #{my_gru_forward.3} parent=5 // pred_check
      %p1627 = pneg %p1626
    $region46: #{my_gru_forward.3} parent=5 // pred_check_branch
      %1629 = sbr.rel (%p1627) target = $region48
    $region47: #{my_gru_forward.3} parent=5 // pred_region
      %s1630 = ssub.s32 %s10, 2
      // Predicated region
      $region49: #{my_gru_forward.3} parent=47 // pred_check
        %p1631 = pneg %p128
      $region50: #{my_gru_forward.3} parent=47 // pred_check_branch
        %1633 = sbr.rel (%p1631) target = $region52
      $region51: #{my_gru_forward.3} parent=47 // pred_region
        %s1634 = smul.u32 8, %s16
        %p1635 = scmp.lt.s32.totalorder %s1634, 15
        %s1636 = scalar_select %p1635, %s1634, 15
        %s1637 = smul.addr %s1636, 8
        %s1638 = scalar_lea.vmem %s4, %s1637
      $region52: #{my_gru_forward.3} parent=47 // pred_fallthru
        _
    $region48: #{my_gru_forward.3} parent=5 // pred_fallthru
      _
  $region6: #{my_gru_forward.3} parent=0 // loop_footer
    %s14 = sadd.s32 1, %s10
  $region7: #{my_gru_forward.3} parent=0 // loop_footer_branch
    %9 = sbr.rel target = $region3
  $region8: #{my_gru_forward.3} parent=0 // loop_exit
    _

</llo_original>
